<compile_context>
chip_gen: v6e
topology: v6e:2x2x1
jax: 0.10.0
libtpu: 0.0.40
codegen_flags: <defaults>
</compile_context>

<pallas_src>
import jax
import jax.numpy as jnp
from jax import lax
from jax.experimental import pallas as pl
from jax.experimental.pallas import tpu as pltpu


# --------------------------------------------------------------------------
# Fused kernel: bn1 -> relu1 -> conv1(1x1) -> bn2 -> relu2 -> conv2(3x3)
# One grid step handles one (batch, H-tile) block of `th` output rows.
# --------------------------------------------------------------------------
def _dense_layer_kernel(xc_ref, xt_ref, xb_ref, s1_ref, b1_ref, w1_ref,
                        b2_ref, w2_ref, o_ref, slab_ref):
    _, th, W, c_out = o_ref.shape
    c_mid = w1_ref.shape[1]
    c_in = xc_ref.shape[3]

    h_idx = pl.program_id(1)
    n_h = pl.num_programs(1)

    # ---- assemble (th+2, W, c_in) rows: [top halo | tile rows | bottom halo]
    x_all = jnp.concatenate([xt_ref[0], xc_ref[0], xb_ref[0]], axis=0)
    x_all = x_all.reshape((th + 2) * W, c_in)

    # ---- bn1 + relu1 in f32 (VPU), bf16 operands for the MXU
    h1 = jnp.maximum(x_all * s1_ref[...] + b1_ref[...], 0.0)
    h1 = h1.astype(jnp.bfloat16)

    # ---- conv1 (1x1) == matmul; bn2 scale pre-folded into w1; f32 accumulate
    y = jnp.dot(h1, w1_ref[...], preferred_element_type=jnp.float32)

    # ---- bn2 shift + relu2; keep the bottleneck slab in VMEM only (bf16)
    z = jnp.maximum(y + b2_ref[...], 0.0)
    slab_ref[...] = z.reshape(th + 2, W, c_mid).astype(jnp.bfloat16)

    # ---- conv2 zero-padding rows at the image boundary
    @pl.when(h_idx == 0)
    def _():
        slab_ref[0] = jnp.zeros((W, c_mid), jnp.bfloat16)

    @pl.when(h_idx == n_h - 1)
    def _():
        slab_ref[th + 1] = jnp.zeros((W, c_mid), jnp.bfloat16)

    # ---- conv2 (3x3, pad=1): one wide matmul per kh (kw taps packed along the
    #      output columns), then combine the kw slices with XLU rolls + masks.
    wcoord = lax.broadcasted_iota(jnp.int32, (th, W, c_out), 1)
    acc = jnp.zeros((th, W, c_out), jnp.float32)
    for kh in range(3):
        inp = slab_ref[kh:kh + th]                       # (th, W, c_mid), leading-axis view
        res = jnp.dot(inp.reshape(th * W, c_mid), w2_ref[kh],
                      preferred_element_type=jnp.float32)  # (th*W, 3*c_out)
        res = res.reshape(th, W, 3 * c_out)
        # kw = 0 tap: out[., x] += res0[., x-1]   (x == 0 -> zero pad)
        r0 = pltpu.roll(res[:, :, 0:c_out], shift=1, axis=1)
        acc = acc + jnp.where(wcoord >= 1, r0, 0.0)
        # kw = 1 tap: aligned
        acc = acc + res[:, :, c_out:2 * c_out]
        # kw = 2 tap: out[., x] += res2[., x+1]   (x == W-1 -> zero pad)
        r2 = pltpu.roll(res[:, :, 2 * c_out:3 * c_out], shift=W - 1, axis=1)
        acc = acc + jnp.where(wcoord <= W - 2, r2, 0.0)

    o_ref[0] = acc
    # TODO(synk): lane-dense (W*c_out) output slab skipped to keep the minor-dim
    #             reshape out of the lowering-risk path.


# --------------------------------------------------------------------------
# _DenseLayer forward (inference)
# --------------------------------------------------------------------------
def dense_layer_forward(x_nchw, params, *, tile_h=8, eps=1e-5):
    """x: (N, C_in, H, W) (or a list of feature tensors, concatenated on C)."""
    if isinstance(x_nchw, (list, tuple)):
        x_nchw = jnp.concatenate(x_nchw, axis=1)         # DenseNet feature concat
    N, C, H, W = x_nchw.shape

    gamma1, beta1, mean1, var1 = params["bn1"]
    gamma2, beta2, mean2, var2 = params["bn2"]
    s1 = gamma1 / jnp.sqrt(var1 + eps)
    b1 = beta1 - mean1 * s1
    s2 = gamma2 / jnp.sqrt(var2 + eps)
    b2 = beta2 - mean2 * s2

    # Fold bn2 scale into the 1x1 conv weight; bf16 MXU operands.
    w1f = (params["w1"] * s2[None, :]).astype(jnp.bfloat16)      # (C_in, c_mid)
    c_mid = w1f.shape[1]
    w2 = params["w2"]                                            # (3, 3, c_mid, c_out) HWIO
    c_out = w2.shape[-1]
    # Pack the 3 kw taps along output columns: (3, c_mid, 3*c_out).
    w2p = jnp.transpose(w2, (0, 2, 1, 3)).reshape(3, c_mid, 3 * c_out)
    w2p = w2p.astype(jnp.bfloat16)

    x = jnp.transpose(x_nchw, (0, 2, 3, 1)).astype(jnp.float32)  # NHWC

    th = tile_h if H % tile_h == 0 else H
    grid = (N, H // th)

    out_nhwc = pl.pallas_call(
        _dense_layer_kernel,
        out_shape=jax.ShapeDtypeStruct((N, H, W, c_out), jnp.float32),
        grid_spec=pltpu.PrefetchScalarGridSpec(
            num_scalar_prefetch=0,
            grid=grid,
            in_specs=[
                # center tile rows [h*th, (h+1)*th)
                pl.BlockSpec((1, th, W, C), lambda n, h: (n, h, 0, 0)),
                # top halo row h*th-1 (clamped; zeroed in-kernel when h == 0)
                pl.BlockSpec((1, 1, W, C),
                             lambda n, h: (n, jnp.maximum(h * th - 1, 0), 0, 0)),
                # bottom halo row (h+1)*th (clamped; zeroed in-kernel at last h)
                pl.BlockSpec((1, 1, W, C),
                             lambda n, h: (n, jnp.minimum((h + 1) * th, H - 1), 0, 0)),
                pl.BlockSpec((1, C), lambda n, h: (0, 0)),             # bn1 scale
                pl.BlockSpec((1, C), lambda n, h: (0, 0)),             # bn1 shift
                pl.BlockSpec((C, c_mid), lambda n, h: (0, 0)),         # w1 (bn2 folded)
                pl.BlockSpec((1, c_mid), lambda n, h: (0, 0)),         # bn2 shift
                pl.BlockSpec((3, c_mid, 3 * c_out), lambda n, h: (0, 0, 0)),  # packed w2
            ],
            out_specs=pl.BlockSpec((1, th, W, c_out), lambda n, h: (n, h, 0, 0)),
            scratch_shapes=[pltpu.VMEM((th + 2, W, c_mid), jnp.bfloat16)],
        ),
        compiler_params=pltpu.CompilerParams(
            dimension_semantics=("parallel", "parallel")),
        # NOTE: blocks here are KB-scale; for production DenseNet shapes set
        # vmem_limit_bytes explicitly (v7x has 64 MiB physical VMEM).
    )(x, x, x, s1[None, :], b1[None, :], w1f, b2[None, :], w2p)

    # dropout: identity in eval mode.
    return jnp.transpose(out_nhwc, (0, 3, 1, 2))                 # back to NCHW


# --------------------------------------------------------------------------
# Pure-JAX reference mirroring the kernel's mixed precision
# (bf16 MXU operands, f32 accumulation, bn folded to scale/shift).
# --------------------------------------------------------------------------
def dense_layer_reference(x_nchw, params, eps=1e-5):
    x = jnp.transpose(x_nchw, (0, 2, 3, 1)).astype(jnp.float32)
    g1, be1, m1, v1 = params["bn1"]
    g2, be2, m2, v2 = params["bn2"]
    s1 = g1 / jnp.sqrt(v1 + eps)
    b1 = be1 - m1 * s1
    s2 = g2 / jnp.sqrt(v2 + eps)
    b2 = be2 - m2 * s2

    h = jnp.maximum(x * s1 + b1, 0.0).astype(jnp.bfloat16)
    w1f = (params["w1"] * s2[None, :]).astype(jnp.bfloat16)
    y = jnp.einsum("nhwc,cd->nhwd", h, w1f,
                   preferred_element_type=jnp.float32)
    z = jnp.maximum(y + b2, 0.0).astype(jnp.bfloat16)
    w2 = params["w2"].astype(jnp.bfloat16)
    out = lax.conv_general_dilated(z, w2, (1, 1), "SAME",
                                   dimension_numbers=("NHWC", "HWIO", "NHWC"),
                                   preferred_element_type=jnp.float32)
    return jnp.transpose(out, (0, 3, 1, 2))


if __name__ == "__main__":
    # Small DenseNet121-style config: growth_rate=32, bn_size=4 -> c_mid=128.
    batch, num_input_features, H, W = 2, 64, 16, 16
    growth_rate, bn_size = 32, 4
    c_mid = bn_size * growth_rate                                # 128
    drop_rate = 0.2                                              # identity at eval

    key = jax.random.PRNGKey(0)
    ks = jax.random.split(key, 10)
    x = jax.random.normal(ks[0], (batch, num_input_features, H, W),
                          dtype=jnp.float32)

    params = {
        # BatchNorm2d(num_input_features): gamma, beta, running_mean, running_var
        "bn1": (
            1.0 + 0.1 * jax.random.normal(ks[1], (num_input_features,)),
            0.1 * jax.random.normal(ks[2], (num_input_features,)),
            0.1 * jax.random.normal(ks[3], (num_input_features,)),
            1.0 + 0.1 * jax.random.uniform(ks[4], (num_input_features,)),
        ),
        # Conv2d(num_input_features, c_mid, 1x1, bias=False) stored as (Cin, Cmid)
        "w1": 0.1 * jax.random.normal(ks[5], (num_input_features, c_mid),
                                      dtype=jnp.float32),
        # BatchNorm2d(c_mid)
        "bn2": (
            1.0 + 0.1 * jax.random.normal(ks[6], (c_mid,)),
            0.1 * jax.random.normal(ks[7], (c_mid,)),
            0.1 * jax.random.normal(ks[8], (c_mid,)),
            1.0 + 0.1 * jax.random.uniform(ks[9], (c_mid,)),
        ),
        # Conv2d(c_mid, growth_rate, 3x3, pad=1, bias=False) stored HWIO
        "w2": 0.1 * jax.random.normal(jax.random.PRNGKey(42),
                                      (3, 3, c_mid, growth_rate),
                                      dtype=jnp.float32),
    }

    out = jax.block_until_ready(dense_layer_forward(x, params))
    assert out.shape == (batch, growth_rate, H, W), out.shape

    ref = jax.block_until_ready(dense_layer_reference(x, params))
    max_err = float(jnp.max(jnp.abs(out - ref)))
    assert jnp.allclose(out, ref, atol=1e-2, rtol=1e-2), max_err

    print("KERNEL_OK")
</pallas_src>

<mosaic_0001>
module attributes {stable_mosaic.version = 11 : i64} {
  func.func @_dense_layer_kernel(%arg0: i32, %arg1: i32, %arg2: memref<1x8x16x64xf32, #tpu.memory_space<vmem>>, %arg3: memref<1x1x16x64xf32, #tpu.memory_space<vmem>>, %arg4: memref<1x1x16x64xf32, #tpu.memory_space<vmem>>, %arg5: memref<1x64xf32, #tpu.memory_space<vmem>>, %arg6: memref<1x64xf32, #tpu.memory_space<vmem>>, %arg7: memref<64x128xbf16, #tpu.memory_space<vmem>>, %arg8: memref<1x128xf32, #tpu.memory_space<vmem>>, %arg9: memref<3x128x96xbf16, #tpu.memory_space<vmem>>, %arg10: memref<1x8x16x32xf32, #tpu.memory_space<vmem>>, %arg11: memref<10x16x128xbf16, #tpu.memory_space<vmem>>) attributes {dimension_semantics = [#tpu.dimension_semantics<parallel>, #tpu.dimension_semantics<parallel>], iteration_bounds = array<i64: 2, 2>, scalar_prefetch = 0 : i64, scratch_operands = 1 : i64, tpu.core_type = #tpu.core_type<tc>, window_params = [{transform_indices = @transform_0, window_bounds = array<i64: 1, 8, 16, 64>}, {transform_indices = @transform_1, window_bounds = array<i64: 1, 1, 16, 64>}, {transform_indices = @transform_2, window_bounds = array<i64: 1, 1, 16, 64>}, {pipeline_mode = #tpu.pipeline_mode<synchronous>, transform_indices = @transform_3, window_bounds = array<i64: 1, 64>}, {pipeline_mode = #tpu.pipeline_mode<synchronous>, transform_indices = @transform_4, window_bounds = array<i64: 1, 64>}, {pipeline_mode = #tpu.pipeline_mode<synchronous>, transform_indices = @transform_5, window_bounds = array<i64: 64, 128>}, {pipeline_mode = #tpu.pipeline_mode<synchronous>, transform_indices = @transform_6, window_bounds = array<i64: 1, 128>}, {pipeline_mode = #tpu.pipeline_mode<synchronous>, transform_indices = @transform_7, window_bounds = array<i64: 3, 128, 96>}, {transform_indices = @transform_8, window_bounds = array<i64: 1, 8, 16, 32>}]} {
    %c0 = arith.constant 0 : index
    %c0_0 = arith.constant 0 : index
    %c0_1 = arith.constant 0 : index
    %c0_2 = arith.constant 0 : index
    %0 = vector.load %arg3[%c0, %c0_0, %c0_1, %c0_2] : memref<1x1x16x64xf32, #tpu.memory_space<vmem>>, vector<1x1x16x64xf32>
    %1 = vector.shape_cast %0 : vector<1x1x16x64xf32> to vector<1x16x64xf32>
    %c0_3 = arith.constant 0 : index
    %c0_4 = arith.constant 0 : index
    %c0_5 = arith.constant 0 : index
    %c0_6 = arith.constant 0 : index
    %2 = vector.load %arg2[%c0_3, %c0_4, %c0_5, %c0_6] : memref<1x8x16x64xf32, #tpu.memory_space<vmem>>, vector<1x8x16x64xf32>
    %3 = vector.shape_cast %2 : vector<1x8x16x64xf32> to vector<8x16x64xf32>
    %c0_7 = arith.constant 0 : index
    %c0_8 = arith.constant 0 : index
    %c0_9 = arith.constant 0 : index
    %c0_10 = arith.constant 0 : index
    %4 = vector.load %arg4[%c0_7, %c0_8, %c0_9, %c0_10] : memref<1x1x16x64xf32, #tpu.memory_space<vmem>>, vector<1x1x16x64xf32>
    %5 = vector.shape_cast %4 : vector<1x1x16x64xf32> to vector<1x16x64xf32>
    %6 = tpu.concatenate %1, %3, %5 in 0 : vector<1x16x64xf32>, vector<8x16x64xf32>, vector<1x16x64xf32> -> vector<10x16x64xf32>
    %7 = vector.shape_cast %6 : vector<10x16x64xf32> to vector<160x64xf32>
    %c0_11 = arith.constant 0 : index
    %c0_12 = arith.constant 0 : index
    %8 = vector.load %arg5[%c0_11, %c0_12] : memref<1x64xf32, #tpu.memory_space<vmem>>, vector<1x64xf32>
    %9 = vector.broadcast %8 : vector<1x64xf32> to vector<160x64xf32>
    %10 = arith.mulf %7, %9 : vector<160x64xf32>
    %c0_13 = arith.constant 0 : index
    %c0_14 = arith.constant 0 : index
    %11 = vector.load %arg6[%c0_13, %c0_14] : memref<1x64xf32, #tpu.memory_space<vmem>>, vector<1x64xf32>
    %12 = vector.broadcast %11 : vector<1x64xf32> to vector<160x64xf32>
    %13 = arith.addf %10, %12 : vector<160x64xf32>
    %cst = arith.constant 0.000000e+00 : f32
    %14 = vector.broadcast %cst : f32 to vector<160x64xf32>
    %15 = arith.maximumf %13, %14 : vector<160x64xf32>
    %16 = arith.truncf %15 : vector<160x64xf32> to vector<160x64xbf16>
    %c0_15 = arith.constant 0 : index
    %c0_16 = arith.constant 0 : index
    %17 = vector.load %arg7[%c0_15, %c0_16] : memref<64x128xbf16, #tpu.memory_space<vmem>>, vector<64x128xbf16>
    %cst_17 = arith.constant dense<0.000000e+00> : vector<160x128xf32>
    %18 = tpu.matmul %16, %17, %cst_17 {dimension_numbers = #tpu.dot_dimension_numbers<[1], [0], [0], [1], [0, 0, 1, 1], [], []>} : vector<160x64xbf16>, vector<64x128xbf16>, vector<160x128xf32> -> vector<160x128xf32>
    %c0_18 = arith.constant 0 : index
    %c0_19 = arith.constant 0 : index
    %19 = vector.load %arg8[%c0_18, %c0_19] : memref<1x128xf32, #tpu.memory_space<vmem>>, vector<1x128xf32>
    %20 = vector.broadcast %19 : vector<1x128xf32> to vector<160x128xf32>
    %21 = arith.addf %18, %20 : vector<160x128xf32>
    %cst_20 = arith.constant 0.000000e+00 : f32
    %22 = vector.broadcast %cst_20 : f32 to vector<160x128xf32>
    %23 = arith.maximumf %21, %22 : vector<160x128xf32>
    %24 = vector.shape_cast %23 : vector<160x128xf32> to vector<10x16x128xf32>
    %25 = arith.truncf %24 : vector<10x16x128xf32> to vector<10x16x128xbf16>
    %c0_21 = arith.constant 0 : index
    %c0_22 = arith.constant 0 : index
    %c0_23 = arith.constant 0 : index
    %26 = vector.load %arg11[%c0_21, %c0_22, %c0_23] : memref<10x16x128xbf16, #tpu.memory_space<vmem>>, vector<10x16x128xbf16>
    tpu.vector_store %arg11[%c0_21, %c0_22, %c0_23], %25 {strides = array<i32>} : memref<10x16x128xbf16, #tpu.memory_space<vmem>>, vector<10x16x128xbf16>,
    %c0_i32 = arith.constant 0 : i32
    %27 = arith.cmpi eq, %arg1, %c0_i32 : i32
    %28 = arith.extui %27 : i1 to i32
    %c0_i32_24 = arith.constant 0 : i32
    %29 = arith.cmpi ne, %28, %c0_i32_24 : i32
    scf.if %29 {
      %cst_66 = arith.constant 0.000000e+00 : bf16
      %104 = vector.broadcast %cst_66 : bf16 to vector<16x128xbf16>
      %c0_67 = arith.constant 0 : index
      %c0_68 = arith.constant 0 : index
      %c0_69 = arith.constant 0 : index
      %105 = vector.load %arg11[%c0_67, %c0_68, %c0_69] : memref<10x16x128xbf16, #tpu.memory_space<vmem>>, vector<1x16x128xbf16>
      %106 = vector.shape_cast %105 : vector<1x16x128xbf16> to vector<16x128xbf16>
      %107 = vector.shape_cast %104 : vector<16x128xbf16> to vector<1x16x128xbf16>
      tpu.vector_store %arg11[%c0_67, %c0_68, %c0_69], %107 {strides = array<i32>} : memref<10x16x128xbf16, #tpu.memory_space<vmem>>, vector<1x16x128xbf16>,
    } else {
    }
    %c1_i32 = arith.constant 1 : i32
    %30 = arith.cmpi eq, %arg1, %c1_i32 : i32
    %31 = arith.extui %30 : i1 to i32
    %c0_i32_25 = arith.constant 0 : i32
    %32 = arith.cmpi ne, %31, %c0_i32_25 : i32
    scf.if %32 {
      %cst_66 = arith.constant 0.000000e+00 : bf16
      %104 = vector.broadcast %cst_66 : bf16 to vector<16x128xbf16>
      %c9 = arith.constant 9 : index
      %c0_67 = arith.constant 0 : index
      %c0_68 = arith.constant 0 : index
      %105 = vector.load %arg11[%c9, %c0_67, %c0_68] : memref<10x16x128xbf16, #tpu.memory_space<vmem>>, vector<1x16x128xbf16>
      %106 = vector.shape_cast %105 : vector<1x16x128xbf16> to vector<16x128xbf16>
      %107 = vector.shape_cast %104 : vector<16x128xbf16> to vector<1x16x128xbf16>
      tpu.vector_store %arg11[%c9, %c0_67, %c0_68], %107 {strides = array<i32>} : memref<10x16x128xbf16, #tpu.memory_space<vmem>>, vector<1x16x128xbf16>,
    } else {
    }
    %33 = tpu.iota {dimensions = array<i32: 1>} : vector<8x16x32xi32>
    %cst_26 = arith.constant 0.000000e+00 : f32
    %34 = vector.broadcast %cst_26 : f32 to vector<8x16x32xf32>
    %c0_27 = arith.constant 0 : index
    %c0_28 = arith.constant 0 : index
    %c0_29 = arith.constant 0 : index
    %35 = vector.load %arg11[%c0_27, %c0_28, %c0_29] : memref<10x16x128xbf16, #tpu.memory_space<vmem>>, vector<8x16x128xbf16>
    %36 = vector.shape_cast %35 : vector<8x16x128xbf16> to vector<128x128xbf16>
    %c0_30 = arith.constant 0 : index
    %c0_31 = arith.constant 0 : index
    %c0_32 = arith.constant 0 : index
    %37 = vector.load %arg9[%c0_30, %c0_31, %c0_32] : memref<3x128x96xbf16, #tpu.memory_space<vmem>>, vector<1x128x96xbf16>
    %38 = vector.shape_cast %37 : vector<1x128x96xbf16> to vector<128x96xbf16>
    %cst_33 = arith.constant dense<0.000000e+00> : vector<128x96xf32>
    %39 = tpu.matmul %36, %38, %cst_33 {dimension_numbers = #tpu.dot_dimension_numbers<[1], [0], [0], [1], [0, 0, 1, 1], [], []>} : vector<128x128xbf16>, vector<128x96xbf16>, vector<128x96xf32> -> vector<128x96xf32>
    %40 = vector.shape_cast %39 : vector<128x96xf32> to vector<8x16x96xf32>
    %41 = vector.extract_strided_slice %40 {offsets = [0, 0, 0], sizes = [8, 16, 32], strides = [1, 1, 1]} : vector<8x16x96xf32> to vector<8x16x32xf32>
    %c1_i32_34 = arith.constant 1 : i32
    %42 = tpu.dynamic_rotate %41 by %c1_i32_34 dim 1 : vector<8x16x32xf32>, i32 -> vector<8x16x32xf32>
    %c1_i32_35 = arith.constant 1 : i32
    %43 = vector.broadcast %c1_i32_35 : i32 to vector<8x16x32xi32>
    %44 = arith.cmpi sge, %33, %43 : vector<8x16x32xi32>
    %cst_36 = arith.constant 0.000000e+00 : f32
    %45 = vector.broadcast %cst_36 : f32 to vector<8x16x32xf32>
    %46 = arith.select %44, %42, %45 : vector<8x16x32xi1>, vector<8x16x32xf32>
    %47 = arith.addf %34, %46 : vector<8x16x32xf32>
    %48 = vector.extract_strided_slice %40 {offsets = [0, 0, 32], sizes = [8, 16, 32], strides = [1, 1, 1]} : vector<8x16x96xf32> to vector<8x16x32xf32>
    %49 = arith.addf %47, %48 : vector<8x16x32xf32>
    %50 = vector.extract_strided_slice %40 {offsets = [0, 0, 64], sizes = [8, 16, 32], strides = [1, 1, 1]} : vector<8x16x96xf32> to vector<8x16x32xf32>
    %c15_i32 = arith.constant 15 : i32
    %51 = tpu.dynamic_rotate %50 by %c15_i32 dim 1 : vector<8x16x32xf32>, i32 -> vector<8x16x32xf32>
    %c14_i32 = arith.constant 14 : i32
    %52 = vector.broadcast %c14_i32 : i32 to vector<8x16x32xi32>
    %53 = arith.cmpi sle, %33, %52 : vector<8x16x32xi32>
    %cst_37 = arith.constant 0.000000e+00 : f32
    %54 = vector.broadcast %cst_37 : f32 to vector<8x16x32xf32>
    %55 = arith.select %53, %51, %54 : vector<8x16x32xi1>, vector<8x16x32xf32>
    %56 = arith.addf %49, %55 : vector<8x16x32xf32>
    %c1 = arith.constant 1 : index
    %c0_38 = arith.constant 0 : index
    %c0_39 = arith.constant 0 : index
    %57 = vector.load %arg11[%c1, %c0_38, %c0_39] : memref<10x16x128xbf16, #tpu.memory_space<vmem>>, vector<8x16x128xbf16>
    %58 = vector.shape_cast %57 : vector<8x16x128xbf16> to vector<128x128xbf16>
    %c1_40 = arith.constant 1 : index
    %c0_41 = arith.constant 0 : index
    %c0_42 = arith.constant 0 : index
    %59 = vector.load %arg9[%c1_40, %c0_41, %c0_42] : memref<3x128x96xbf16, #tpu.memory_space<vmem>>, vector<1x128x96xbf16>
    %60 = vector.shape_cast %59 : vector<1x128x96xbf16> to vector<128x96xbf16>
    %cst_43 = arith.constant dense<0.000000e+00> : vector<128x96xf32>
    %61 = tpu.matmul %58, %60, %cst_43 {dimension_numbers = #tpu.dot_dimension_numbers<[1], [0], [0], [1], [0, 0, 1, 1], [], []>} : vector<128x128xbf16>, vector<128x96xbf16>, vector<128x96xf32> -> vector<128x96xf32>
    %62 = vector.shape_cast %61 : vector<128x96xf32> to vector<8x16x96xf32>
    %63 = vector.extract_strided_slice %62 {offsets = [0, 0, 0], sizes = [8, 16, 32], strides = [1, 1, 1]} : vector<8x16x96xf32> to vector<8x16x32xf32>
    %c1_i32_44 = arith.constant 1 : i32
    %64 = tpu.dynamic_rotate %63 by %c1_i32_44 dim 1 : vector<8x16x32xf32>, i32 -> vector<8x16x32xf32>
    %c1_i32_45 = arith.constant 1 : i32
    %65 = vector.broadcast %c1_i32_45 : i32 to vector<8x16x32xi32>
    %66 = arith.cmpi sge, %33, %65 : vector<8x16x32xi32>
    %cst_46 = arith.constant 0.000000e+00 : f32
    %67 = vector.broadcast %cst_46 : f32 to vector<8x16x32xf32>
    %68 = arith.select %66, %64, %67 : vector<8x16x32xi1>, vector<8x16x32xf32>
    %69 = arith.addf %56, %68 : vector<8x16x32xf32>
    %70 = vector.extract_strided_slice %62 {offsets = [0, 0, 32], sizes = [8, 16, 32], strides = [1, 1, 1]} : vector<8x16x96xf32> to vector<8x16x32xf32>
    %71 = arith.addf %69, %70 : vector<8x16x32xf32>
    %72 = vector.extract_strided_slice %62 {offsets = [0, 0, 64], sizes = [8, 16, 32], strides = [1, 1, 1]} : vector<8x16x96xf32> to vector<8x16x32xf32>
    %c15_i32_47 = arith.constant 15 : i32
    %73 = tpu.dynamic_rotate %72 by %c15_i32_47 dim 1 : vector<8x16x32xf32>, i32 -> vector<8x16x32xf32>
    %c14_i32_48 = arith.constant 14 : i32
    %74 = vector.broadcast %c14_i32_48 : i32 to vector<8x16x32xi32>
    %75 = arith.cmpi sle, %33, %74 : vector<8x16x32xi32>
    %cst_49 = arith.constant 0.000000e+00 : f32
    %76 = vector.broadcast %cst_49 : f32 to vector<8x16x32xf32>
    %77 = arith.select %75, %73, %76 : vector<8x16x32xi1>, vector<8x16x32xf32>
    %78 = arith.addf %71, %77 : vector<8x16x32xf32>
    %c2 = arith.constant 2 : index
    %c0_50 = arith.constant 0 : index
    %c0_51 = arith.constant 0 : index
    %79 = vector.load %arg11[%c2, %c0_50, %c0_51] : memref<10x16x128xbf16, #tpu.memory_space<vmem>>, vector<8x16x128xbf16>
    %80 = vector.shape_cast %79 : vector<8x16x128xbf16> to vector<128x128xbf16>
    %c2_52 = arith.constant 2 : index
    %c0_53 = arith.constant 0 : index
    %c0_54 = arith.constant 0 : index
    %81 = vector.load %arg9[%c2_52, %c0_53, %c0_54] : memref<3x128x96xbf16, #tpu.memory_space<vmem>>, vector<1x128x96xbf16>
    %82 = vector.shape_cast %81 : vector<1x128x96xbf16> to vector<128x96xbf16>
    %cst_55 = arith.constant dense<0.000000e+00> : vector<128x96xf32>
    %83 = tpu.matmul %80, %82, %cst_55 {dimension_numbers = #tpu.dot_dimension_numbers<[1], [0], [0], [1], [0, 0, 1, 1], [], []>} : vector<128x128xbf16>, vector<128x96xbf16>, vector<128x96xf32> -> vector<128x96xf32>
    %84 = vector.shape_cast %83 : vector<128x96xf32> to vector<8x16x96xf32>
    %85 = vector.extract_strided_slice %84 {offsets = [0, 0, 0], sizes = [8, 16, 32], strides = [1, 1, 1]} : vector<8x16x96xf32> to vector<8x16x32xf32>
    %c1_i32_56 = arith.constant 1 : i32
    %86 = tpu.dynamic_rotate %85 by %c1_i32_56 dim 1 : vector<8x16x32xf32>, i32 -> vector<8x16x32xf32>
    %c1_i32_57 = arith.constant 1 : i32
    %87 = vector.broadcast %c1_i32_57 : i32 to vector<8x16x32xi32>
    %88 = arith.cmpi sge, %33, %87 : vector<8x16x32xi32>
    %cst_58 = arith.constant 0.000000e+00 : f32
    %89 = vector.broadcast %cst_58 : f32 to vector<8x16x32xf32>
    %90 = arith.select %88, %86, %89 : vector<8x16x32xi1>, vector<8x16x32xf32>
    %91 = arith.addf %78, %90 : vector<8x16x32xf32>
    %92 = vector.extract_strided_slice %84 {offsets = [0, 0, 32], sizes = [8, 16, 32], strides = [1, 1, 1]} : vector<8x16x96xf32> to vector<8x16x32xf32>
    %93 = arith.addf %91, %92 : vector<8x16x32xf32>
    %94 = vector.extract_strided_slice %84 {offsets = [0, 0, 64], sizes = [8, 16, 32], strides = [1, 1, 1]} : vector<8x16x96xf32> to vector<8x16x32xf32>
    %c15_i32_59 = arith.constant 15 : i32
    %95 = tpu.dynamic_rotate %94 by %c15_i32_59 dim 1 : vector<8x16x32xf32>, i32 -> vector<8x16x32xf32>
    %c14_i32_60 = arith.constant 14 : i32
    %96 = vector.broadcast %c14_i32_60 : i32 to vector<8x16x32xi32>
    %97 = arith.cmpi sle, %33, %96 : vector<8x16x32xi32>
    %cst_61 = arith.constant 0.000000e+00 : f32
    %98 = vector.broadcast %cst_61 : f32 to vector<8x16x32xf32>
    %99 = arith.select %97, %95, %98 : vector<8x16x32xi1>, vector<8x16x32xf32>
    %100 = arith.addf %93, %99 : vector<8x16x32xf32>
    %c0_62 = arith.constant 0 : index
    %c0_63 = arith.constant 0 : index
    %c0_64 = arith.constant 0 : index
    %c0_65 = arith.constant 0 : index
    %101 = vector.load %arg10[%c0_62, %c0_63, %c0_64, %c0_65] : memref<1x8x16x32xf32, #tpu.memory_space<vmem>>, vector<1x8x16x32xf32>
    %102 = vector.shape_cast %101 : vector<1x8x16x32xf32> to vector<8x16x32xf32>
    %103 = vector.shape_cast %100 : vector<8x16x32xf32> to vector<1x8x16x32xf32>
    tpu.vector_store %arg10[%c0_62, %c0_63, %c0_64, %c0_65], %103 {strides = array<i32>} : memref<1x8x16x32xf32, #tpu.memory_space<vmem>>, vector<1x8x16x32xf32>,
    return
  }
  func.func @transform_0(%arg0: i32, %arg1: i32) -> (i32, i32, i32, i32) {
    %c0_i32 = arith.constant 0 : i32
    %c0_i32_0 = arith.constant 0 : i32
    %c0_i32_1 = arith.constant 0 : i32
    return %arg0, %arg1, %c0_i32, %c0_i32_0 : i32, i32, i32, i32
  }
  func.func @transform_1(%arg0: i32, %arg1: i32) -> (i32, i32, i32, i32) {
    %c8_i32 = arith.constant 8 : i32
    %0 = arith.muli %arg1, %c8_i32 : i32
    %c1_i32 = arith.constant 1 : i32
    %1 = arith.subi %0, %c1_i32 : i32
    %c0_i32 = arith.constant 0 : i32
    %2 = arith.maxsi %1, %c0_i32 : i32
    %c0_i32_0 = arith.constant 0 : i32
    %c0_i32_1 = arith.constant 0 : i32
    %c0_i32_2 = arith.constant 0 : i32
    return %arg0, %2, %c0_i32_0, %c0_i32_1 : i32, i32, i32, i32
  }
  func.func @transform_2(%arg0: i32, %arg1: i32) -> (i32, i32, i32, i32) {
    %c1_i32 = arith.constant 1 : i32
    %0 = arith.addi %arg1, %c1_i32 : i32
    %c8_i32 = arith.constant 8 : i32
    %1 = arith.muli %0, %c8_i32 : i32
    %c15_i32 = arith.constant 15 : i32
    %2 = arith.minsi %1, %c15_i32 : i32
    %c0_i32 = arith.constant 0 : i32
    %c0_i32_0 = arith.constant 0 : i32
    %c0_i32_1 = arith.constant 0 : i32
    return %arg0, %2, %c0_i32, %c0_i32_0 : i32, i32, i32, i32
  }
  func.func @transform_3(%arg0: i32, %arg1: i32) -> (i32, i32) {
    %c0_i32 = arith.constant 0 : i32
    %c0_i32_0 = arith.constant 0 : i32
    %c0_i32_1 = arith.constant 0 : i32
    return %c0_i32, %c0_i32_0 : i32, i32
  }
  func.func @transform_4(%arg0: i32, %arg1: i32) -> (i32, i32) {
    %c0_i32 = arith.constant 0 : i32
    %c0_i32_0 = arith.constant 0 : i32
    %c0_i32_1 = arith.constant 0 : i32
    return %c0_i32, %c0_i32_0 : i32, i32
  }
  func.func @transform_5(%arg0: i32, %arg1: i32) -> (i32, i32) {
    %c0_i32 = arith.constant 0 : i32
    %c0_i32_0 = arith.constant 0 : i32
    %c0_i32_1 = arith.constant 0 : i32
    return %c0_i32, %c0_i32_0 : i32, i32
  }
  func.func @transform_6(%arg0: i32, %arg1: i32) -> (i32, i32) {
    %c0_i32 = arith.constant 0 : i32
    %c0_i32_0 = arith.constant 0 : i32
    %c0_i32_1 = arith.constant 0 : i32
    return %c0_i32, %c0_i32_0 : i32, i32
  }
  func.func @transform_7(%arg0: i32, %arg1: i32) -> (i32, i32, i32) {
    %c0_i32 = arith.constant 0 : i32
    %c0_i32_0 = arith.constant 0 : i32
    %c0_i32_1 = arith.constant 0 : i32
    %c0_i32_2 = arith.constant 0 : i32
    return %c0_i32, %c0_i32_0, %c0_i32_1 : i32, i32, i32
  }
  func.func @transform_8(%arg0: i32, %arg1: i32) -> (i32, i32, i32, i32) {
    %c0_i32 = arith.constant 0 : i32
    %c0_i32_0 = arith.constant 0 : i32
    %c0_i32_1 = arith.constant 0 : i32
    return %arg0, %arg1, %c0_i32, %c0_i32_0 : i32, i32, i32, i32
  }
}

</mosaic_0001>

<llo_original>
// kernel: tpu_custom_call.1
$region0: #{tpu_custom_call.1}
  #allocation0 [shape = 'u32[]', space=smem, size = 0x4, offset = 0x4, fixed_abs, tag = 'smem constant byte address 0x4 - core index']
  #allocation1 [shape = 'u32[144,128]{1,0:T(1,128)}', space=vmem, size = 0x12000, scoped, tag = 'internal scratch']
  #allocation2 [shape = 'bf16[10,16,128]{2,1,0:T(8,128)(2,1)}', space=vmem, size = 0xa000, scoped, tag = 'scratch operand']
  %s0 = inlined_call_operand.hbm [shape: f32[2,16,16,64], index: 0, kind: input, shape index: {}]
  %s1 = inlined_call_operand.hbm [shape: f32[2,16,16,64], index: 1, kind: input, shape index: {}]
  %s2 = inlined_call_operand.hbm [shape: f32[2,16,16,64], index: 2, kind: input, shape index: {}]
  %s3 = inlined_call_operand.vmem [shape: f32[1,64], index: 3, kind: input, shape index: {}]
  %s4 = inlined_call_operand.vmem [shape: f32[1,64], index: 4, kind: input, shape index: {}]
  %s5 = inlined_call_operand.vmem [shape: bf16[64,128], index: 5, kind: input, shape index: {}]
  %s6 = inlined_call_operand.vmem [shape: f32[1,128], index: 6, kind: input, shape index: {}]
  %s7 = inlined_call_operand.vmem [shape: bf16[3,128,96], index: 7, kind: input, shape index: {}]
  %s8 = inlined_call_operand.hbm [shape: f32[2,16,16,32], index: 8, kind: output, shape index: {}]
  %s9 = sld [smem:[#allocation0]]
  $region85: #{tpu_custom_call.1} parent=0
    _
  %s11 = ssub.s32 1, %s9
  %s12 = scalar_select 0, %s11, %s9
  $region1: #{tpu_custom_call.1} parent=0
    #allocation3 [shape = 'u8[131072]{0}', space=vmem, size = 0x20000, scoped, tag = 'input window, operand 0']
    #allocation4 [shape = 's32[2]{0}', space=sflag, size = 0x8, scoped, tag = 'scoped memory for tpu_custom_call.1']
    #allocation5 [shape = 's32[2]{0}', space=sflag, size = 0x8, scoped, tag = 'scoped memory for tpu_custom_call.1']
    #allocation6 [shape = 'u8[16384]{0}', space=vmem, size = 0x4000, scoped, tag = 'input window, operand 1']
    #allocation7 [shape = 's32[2]{0}', space=sflag, size = 0x8, scoped, tag = 'scoped memory for tpu_custom_call.1']
    #allocation8 [shape = 'u8[16384]{0}', space=vmem, size = 0x4000, scoped, tag = 'input window, operand 2']
    #allocation9 [shape = 'u8[131072]{0}', space=vmem, size = 0x20000, scoped, tag = 'output window, operand 0']
    %13 = vsyncpa [#allocation4], 0
    %s14 = scalar_lea.sflag [#allocation4], 1
    %15 = vsyncpa %s14, 0
    %16 = vsyncpa [#allocation7], 0
    %s17 = scalar_lea.sflag [#allocation7], 1
    %18 = vsyncpa %s17, 0
    %19 = vsyncpa [#allocation5], 0
    %s20 = scalar_lea.sflag [#allocation5], 1
    %21 = vsyncpa %s20, 0
    loop: start=0, step=1, limit=6
    $region2: #{tpu_custom_call.1} parent=1 // loop_pre_header
      _
    $region3: #{tpu_custom_call.1} parent=1 // loop_header
      %s23 = sphi 0, %s27
      %p24 = scmp.ge.s32.totalorder %s23, 6
      %s30 = sphi 0, %s42
      %s31 = sphi 0, %s38
      %s32 = sphi 0, %s30
      %s33 = sphi 0, %s31
      %s34 = sphi 0, %s32
      %s35 = sphi 0, %s33
      %s47 = sphi 0, %s49
      %s50 = sphi 0, %s47
      %s51 = sphi 0, %s50
      %s67 = sphi 0, %s51
      %s83 = sphi 0, %s85
      %s86 = sphi 0, %s83
      %s87 = sphi 0, %s86
      %s103 = sphi 0, %s87
      %s119 = sphi 0, %s121
      %s122 = sphi 0, %s119
      %s123 = sphi 0, %s122
      %s139 = sphi 0, %s123
      %s143 = sphi 0, %s143
      %s145 = sphi 0, %s143
      %s146 = sphi 0, %s145
      %s160 = sphi 0, %s146
      %s164 = sphi 0, %s164
      %s166 = sphi 0, %s164
      %s167 = sphi 0, %s166
      %s181 = sphi 0, %s167
      %s185 = sphi 0, %s185
      %s187 = sphi 0, %s185
      %s188 = sphi 0, %s187
      %s202 = sphi 0, %s188
      %s206 = sphi 0, %s206
      %s208 = sphi 0, %s206
      %s209 = sphi 0, %s208
      %s223 = sphi 0, %s209
      %s227 = sphi 0, %s227
      %s229 = sphi 0, %s227
      %s230 = sphi 0, %s229
      %s244 = sphi 0, %s230
      %s252 = sphi 0, %s254
      %s255 = sphi 0, %s252
      %s256 = sphi 0, %s255
      %s272 = sphi 0, %s256
    $region4: #{tpu_custom_call.1} parent=1 // loop_header_branch
      %26 = sbr.rel (%p24) target = $region8
    $region5: #{tpu_custom_call.1} parent=1 // loop_body
      %s28 = ssub.s32 %s23, 1
      %s29 = ssub.s32 %s23, 2
      %s36 = sadd.s32 1, %s31
      %p37 = scmp.ge.s32.totalorder %s36, 2
      %s38 = scalar_select %p37, 0, %s36
      %s39 = sadd.s32 1, %s30
      %s40 = scalar_select %p37, %s39, %s30
      %p41 = scmp.ge.s32.totalorder %s40, 2
      %s42 = scalar_select %p41, 0, %s40
      %s43 = ssub.s32 %s30, %s42
      %s44 = ssub.s32 %s31, %s38
      %s45 = sor.u32 %s43, %s44
      %p46 = scmp.eq.s32.totalorder %s45, 0
      %s48 = sadd.s32 %s47, 1
      %s49 = scalar_select %p46, %s47, %s48
      %p52 = pneg %p46
      %p53 = scmp.eq.s32.totalorder %s23, 3
      %p54 = por %p52, %p53
      %p55 = scmp.ne.s32.totalorder %s47, %s50
      %p56 = scmp.eq.s32.totalorder %s23, 0
      %p57 = por %p55, %p56
      %p58 = scmp.ne.s32.totalorder %s47, %s50
      %p59 = scmp.eq.s32.totalorder %s28, 3
      %p60 = por %p58, %p59
      %p61 = scmp.ne.s32.totalorder %s50, %s51
      %p62 = scmp.eq.s32.totalorder %s28, 0
      %p63 = por %p61, %p62
      %p64 = scmp.ne.s32.totalorder %s50, %s51
      %p65 = scmp.eq.s32.totalorder %s29, 3
      %p66 = por %p64, %p65
      %p68 = scmp.ne.s32.totalorder %s51, %s67
      %p69 = scmp.eq.s32.totalorder %s29, 0
      %p70 = por %p68, %p69
      %s71 = smul.u32 %s31, 8
      %s72 = ssub.s32 %s71, 1
      %p73 = scmp.gt.s32.totalorder %s72, 0
      %s74 = scalar_select %p73, %s72, 0
      %s75 = smul.u32 %s38, 8
      %s76 = ssub.s32 %s75, 1
      %p77 = scmp.gt.s32.totalorder %s76, 0
      %s78 = scalar_select %p77, %s76, 0
      %s79 = ssub.s32 %s30, %s42
      %s80 = ssub.s32 %s74, %s78
      %s81 = sor.u32 %s79, %s80
      %p82 = scmp.eq.s32.totalorder %s81, 0
      %s84 = sadd.s32 %s83, 1
      %s85 = scalar_select %p82, %s83, %s84
      %p88 = pneg %p82
      %p89 = scmp.eq.s32.totalorder %s23, 3
      %p90 = por %p88, %p89
      %p91 = scmp.ne.s32.totalorder %s83, %s86
      %p92 = scmp.eq.s32.totalorder %s23, 0
      %p93 = por %p91, %p92
      %p94 = scmp.ne.s32.totalorder %s83, %s86
      %p95 = scmp.eq.s32.totalorder %s28, 3
      %p96 = por %p94, %p95
      %p97 = scmp.ne.s32.totalorder %s86, %s87
      %p98 = scmp.eq.s32.totalorder %s28, 0
      %p99 = por %p97, %p98
      %p100 = scmp.ne.s32.totalorder %s86, %s87
      %p101 = scmp.eq.s32.totalorder %s29, 3
      %p102 = por %p100, %p101
      %p104 = scmp.ne.s32.totalorder %s87, %s103
      %p105 = scmp.eq.s32.totalorder %s29, 0
      %p106 = por %p104, %p105
      %s107 = sadd.s32 %s31, 1
      %s108 = smul.u32 %s107, 8
      %p109 = scmp.lt.s32.totalorder %s108, 15
      %s110 = scalar_select %p109, %s108, 15
      %s111 = sadd.s32 %s38, 1
      %s112 = smul.u32 %s111, 8
      %p113 = scmp.lt.s32.totalorder %s112, 15
      %s114 = scalar_select %p113, %s112, 15
      %s115 = ssub.s32 %s30, %s42
      %s116 = ssub.s32 %s110, %s114
      %s117 = sor.u32 %s115, %s116
      %p118 = scmp.eq.s32.totalorder %s117, 0
      %s120 = sadd.s32 %s119, 1
      %s121 = scalar_select %p118, %s119, %s120
      %p124 = pneg %p118
      %p125 = scmp.eq.s32.totalorder %s23, 3
      %p126 = por %p124, %p125
      %p127 = scmp.ne.s32.totalorder %s119, %s122
      %p128 = scmp.eq.s32.totalorder %s23, 0
      %p129 = por %p127, %p128
      %p130 = scmp.ne.s32.totalorder %s119, %s122
      %p131 = scmp.eq.s32.totalorder %s28, 3
      %p132 = por %p130, %p131
      %p133 = scmp.ne.s32.totalorder %s122, %s123
      %p134 = scmp.eq.s32.totalorder %s28, 0
      %p135 = por %p133, %p134
      %p136 = scmp.ne.s32.totalorder %s122, %s123
      %p137 = scmp.eq.s32.totalorder %s29, 3
      %p138 = por %p136, %p137
      %p140 = scmp.ne.s32.totalorder %s123, %s139
      %p141 = scmp.eq.s32.totalorder %s29, 0
      %p142 = por %p140, %p141
      %s144 = sadd.s32 %s143, 1
      %p147 = scmp.eq.s32.totalorder %s23, 3
      %p148 = scmp.ne.s32.totalorder %s143, %s145
      %p149 = scmp.eq.s32.totalorder %s23, 0
      %p150 = por %p148, %p149
      %p151 = scmp.ne.s32.totalorder %s143, %s145
      %p152 = scmp.eq.s32.totalorder %s28, 3
      %p153 = por %p151, %p152
      %p154 = scmp.ne.s32.totalorder %s145, %s146
      %p155 = scmp.eq.s32.totalorder %s28, 0
      %p156 = por %p154, %p155
      %p157 = scmp.ne.s32.totalorder %s145, %s146
      %p158 = scmp.eq.s32.totalorder %s29, 3
      %p159 = por %p157, %p158
      %p161 = scmp.ne.s32.totalorder %s146, %s160
      %p162 = scmp.eq.s32.totalorder %s29, 0
      %p163 = por %p161, %p162
      %s165 = sadd.s32 %s164, 1
      %p168 = scmp.eq.s32.totalorder %s23, 3
      %p169 = scmp.ne.s32.totalorder %s164, %s166
      %p170 = scmp.eq.s32.totalorder %s23, 0
      %p171 = por %p169, %p170
      %p172 = scmp.ne.s32.totalorder %s164, %s166
      %p173 = scmp.eq.s32.totalorder %s28, 3
      %p174 = por %p172, %p173
      %p175 = scmp.ne.s32.totalorder %s166, %s167
      %p176 = scmp.eq.s32.totalorder %s28, 0
      %p177 = por %p175, %p176
      %p178 = scmp.ne.s32.totalorder %s166, %s167
      %p179 = scmp.eq.s32.totalorder %s29, 3
      %p180 = por %p178, %p179
      %p182 = scmp.ne.s32.totalorder %s167, %s181
      %p183 = scmp.eq.s32.totalorder %s29, 0
      %p184 = por %p182, %p183
      %s186 = sadd.s32 %s185, 1
      %p189 = scmp.eq.s32.totalorder %s23, 3
      %p190 = scmp.ne.s32.totalorder %s185, %s187
      %p191 = scmp.eq.s32.totalorder %s23, 0
      %p192 = por %p190, %p191
      %p193 = scmp.ne.s32.totalorder %s185, %s187
      %p194 = scmp.eq.s32.totalorder %s28, 3
      %p195 = por %p193, %p194
      %p196 = scmp.ne.s32.totalorder %s187, %s188
      %p197 = scmp.eq.s32.totalorder %s28, 0
      %p198 = por %p196, %p197
      %p199 = scmp.ne.s32.totalorder %s187, %s188
      %p200 = scmp.eq.s32.totalorder %s29, 3
      %p201 = por %p199, %p200
      %p203 = scmp.ne.s32.totalorder %s188, %s202
      %p204 = scmp.eq.s32.totalorder %s29, 0
      %p205 = por %p203, %p204
      %s207 = sadd.s32 %s206, 1
      %p210 = scmp.eq.s32.totalorder %s23, 3
      %p211 = scmp.ne.s32.totalorder %s206, %s208
      %p212 = scmp.eq.s32.totalorder %s23, 0
      %p213 = por %p211, %p212
      %p214 = scmp.ne.s32.totalorder %s206, %s208
      %p215 = scmp.eq.s32.totalorder %s28, 3
      %p216 = por %p214, %p215
      %p217 = scmp.ne.s32.totalorder %s208, %s209
      %p218 = scmp.eq.s32.totalorder %s28, 0
      %p219 = por %p217, %p218
      %p220 = scmp.ne.s32.totalorder %s208, %s209
      %p221 = scmp.eq.s32.totalorder %s29, 3
      %p222 = por %p220, %p221
      %p224 = scmp.ne.s32.totalorder %s209, %s223
      %p225 = scmp.eq.s32.totalorder %s29, 0
      %p226 = por %p224, %p225
      %s228 = sadd.s32 %s227, 1
      %p231 = scmp.eq.s32.totalorder %s23, 3
      %p232 = scmp.ne.s32.totalorder %s227, %s229
      %p233 = scmp.eq.s32.totalorder %s23, 0
      %p234 = por %p232, %p233
      %p235 = scmp.ne.s32.totalorder %s227, %s229
      %p236 = scmp.eq.s32.totalorder %s28, 3
      %p237 = por %p235, %p236
      %p238 = scmp.ne.s32.totalorder %s229, %s230
      %p239 = scmp.eq.s32.totalorder %s28, 0
      %p240 = por %p238, %p239
      %p241 = scmp.ne.s32.totalorder %s229, %s230
      %p242 = scmp.eq.s32.totalorder %s29, 3
      %p243 = por %p241, %p242
      %p245 = scmp.ne.s32.totalorder %s230, %s244
      %p246 = scmp.eq.s32.totalorder %s29, 0
      %p247 = por %p245, %p246
      %s248 = ssub.s32 %s30, %s42
      %s249 = ssub.s32 %s31, %s38
      %s250 = sor.u32 %s248, %s249
      %p251 = scmp.eq.s32.totalorder %s250, 0
      %s253 = sadd.s32 %s252, 1
      %s254 = scalar_select %p251, %s252, %s253
      %p257 = pneg %p251
      %p258 = scmp.eq.s32.totalorder %s23, 3
      %p259 = por %p257, %p258
      %p260 = scmp.ne.s32.totalorder %s252, %s255
      %p261 = scmp.eq.s32.totalorder %s23, 0
      %p262 = por %p260, %p261
      %p263 = scmp.ne.s32.totalorder %s252, %s255
      %p264 = scmp.eq.s32.totalorder %s28, 3
      %p265 = por %p263, %p264
      %p266 = scmp.ne.s32.totalorder %s255, %s256
      %p267 = scmp.eq.s32.totalorder %s28, 0
      %p268 = por %p266, %p267
      %p269 = scmp.ne.s32.totalorder %s255, %s256
      %p270 = scmp.eq.s32.totalorder %s29, 3
      %p271 = por %p269, %p270
      %p273 = scmp.ne.s32.totalorder %s256, %s272
      %p274 = scmp.eq.s32.totalorder %s29, 0
      %p275 = por %p273, %p274
      %p276 = scmp.le.s32.totalorder 1, %s23
      %p277 = scmp.lt.s32.totalorder %s23, 5
      %p278 = pnand %p276, %p277
      %p279 = pneg %p278
      // Predicated region
      $region9: #{tpu_custom_call.1} parent=5 // pred_check
        _
      $region10: #{tpu_custom_call.1} parent=5 // pred_check_branch
        %281 = sbr.rel (%p278) target = $region12
      $region11: #{tpu_custom_call.1} parent=5 // pred_region
        %s282 = ssub.s32 %s23, 1
        // Predicated region
        $region13: #{tpu_custom_call.1} parent=11 // pred_check
          %p283 = pneg %p156
        $region14: #{tpu_custom_call.1} parent=11 // pred_check_branch
          %285 = sbr.rel (%p283) target = $region16
        $region15: #{tpu_custom_call.1} parent=11 // pred_region
          _
        $region16: #{tpu_custom_call.1} parent=11 // pred_fallthru
          _
        // Predicated region
        $region17: #{tpu_custom_call.1} parent=11 // pred_check
          %p286 = pneg %p177
        $region18: #{tpu_custom_call.1} parent=11 // pred_check_branch
          %288 = sbr.rel (%p286) target = $region20
        $region19: #{tpu_custom_call.1} parent=11 // pred_region
          _
        $region20: #{tpu_custom_call.1} parent=11 // pred_fallthru
          _
        // Predicated region
        $region21: #{tpu_custom_call.1} parent=11 // pred_check
          %p289 = pneg %p198
        $region22: #{tpu_custom_call.1} parent=11 // pred_check_branch
          %291 = sbr.rel (%p289) target = $region24
        $region23: #{tpu_custom_call.1} parent=11 // pred_region
          _
        $region24: #{tpu_custom_call.1} parent=11 // pred_fallthru
          _
        // Predicated region
        $region25: #{tpu_custom_call.1} parent=11 // pred_check
          %p292 = pneg %p219
        $region26: #{tpu_custom_call.1} parent=11 // pred_check_branch
          %294 = sbr.rel (%p292) target = $region28
        $region27: #{tpu_custom_call.1} parent=11 // pred_region
          _
        $region28: #{tpu_custom_call.1} parent=11 // pred_fallthru
          _
        // Predicated region
        $region29: #{tpu_custom_call.1} parent=11 // pred_check
          %p295 = pneg %p240
        $region30: #{tpu_custom_call.1} parent=11 // pred_check_branch
          %297 = sbr.rel (%p295) target = $region32
        $region31: #{tpu_custom_call.1} parent=11 // pred_region
          _
        $region32: #{tpu_custom_call.1} parent=11 // pred_fallthru
          _
      $region12: #{tpu_custom_call.1} parent=5 // pred_fallthru
        _
      %p298 = scmp.lt.s32.totalorder %s23, 4
      // Predicated region
      $region33: #{tpu_custom_call.1} parent=5 // pred_check
        %p299 = pneg %p298
      $region34: #{tpu_custom_call.1} parent=5 // pred_check_branch
        %301 = sbr.rel (%p299) target = $region36
      $region35: #{tpu_custom_call.1} parent=5 // pred_region
        // Predicated region
        $region37: #{tpu_custom_call.1} parent=35 // pred_check
          %p302 = pneg %p57
        $region38: #{tpu_custom_call.1} parent=35 // pred_check_branch
          %304 = sbr.rel (%p302) target = $region40
        $region39: #{tpu_custom_call.1} parent=35 // pred_region
          %s305 = sand.u32 %s47, 1
          %s306 = scalar_lea.sflag [#allocation4], %s305
          %s307 = sand.u32 %s47, 1
          %s308 = smul.addr %s307, 128
          %s309 = scalar_lea.vmem [#allocation3], %s308
          %s310 = smul.u32 8, %s31
          %s312 = ssub.s32 2048, 2048
          %313 = vsyncadd %s306, %s312
          %s314 = smul.addr %s310, 2
          %s315 = smul.addr %s30, 32
          %s316 = sadd.s32 %s314, %s315
          %s317 = smul.addr %s316, 128
          %s318 = scalar_lea.hbm %s0, %s317
          %s319 = sshll.u32 %s309, 4
          %s320 = int_to_ptr.vmem [resolvable:$true] %s319
          %325 = dma.hbm_to_vmem [thread:$0]  %s318, 2048, %s320, %s306, 128, 128, 8
        $region40: #{tpu_custom_call.1} parent=35 // pred_fallthru
          _
        // Predicated region
        $region41: #{tpu_custom_call.1} parent=35 // pred_check
          %p326 = pneg %p93
        $region42: #{tpu_custom_call.1} parent=35 // pred_check_branch
          %328 = sbr.rel (%p326) target = $region44
        $region43: #{tpu_custom_call.1} parent=35 // pred_region
          %s329 = sand.u32 %s23, 1
          %s330 = scalar_lea.sflag [#allocation7], %s329
          %s331 = sand.u32 %s83, 1
          %s332 = smul.addr %s331, 16
          %s333 = scalar_lea.vmem [#allocation6], %s332
          %s334 = smul.u32 %s31, 8
          %s335 = ssub.s32 %s334, 1
          %p336 = scmp.gt.s32.totalorder %s335, 0
          %s337 = scalar_select %p336, %s335, 0
          %s339 = ssub.s32 256, 256
          %340 = vsyncadd %s330, %s339
          %s341 = smul.addr %s337, 2
          %s342 = smul.addr %s30, 32
          %s343 = sadd.s32 %s341, %s342
          %s344 = smul.addr %s343, 128
          %s345 = scalar_lea.hbm %s1, %s344
          %s346 = sshll.u32 %s333, 4
          %s347 = int_to_ptr.vmem [resolvable:$true] %s346
          %352 = dma.hbm_to_vmem [thread:$0]  %s345, 256, %s347, %s330, 128, 128, 8
        $region44: #{tpu_custom_call.1} parent=35 // pred_fallthru
          _
        // Predicated region
        $region45: #{tpu_custom_call.1} parent=35 // pred_check
          %p353 = pneg %p129
        $region46: #{tpu_custom_call.1} parent=35 // pred_check_branch
          %355 = sbr.rel (%p353) target = $region48
        $region47: #{tpu_custom_call.1} parent=35 // pred_region
          %s356 = sand.u32 %s23, 1
          %s357 = scalar_lea.sflag [#allocation7], %s356
          %s358 = sand.u32 %s119, 1
          %s359 = smul.addr %s358, 16
          %s360 = scalar_lea.vmem [#allocation8], %s359
          %s361 = sadd.s32 %s31, 1
          %s362 = smul.u32 %s361, 8
          %p363 = scmp.lt.s32.totalorder %s362, 15
          %s364 = scalar_select %p363, %s362, 15
          %s366 = ssub.s32 256, 256
          %367 = vsyncadd %s357, %s366
          %s368 = smul.addr %s364, 2
          %s369 = smul.addr %s30, 32
          %s370 = sadd.s32 %s368, %s369
          %s371 = smul.addr %s370, 128
          %s372 = scalar_lea.hbm %s2, %s371
          %s373 = sshll.u32 %s360, 4
          %s374 = int_to_ptr.vmem [resolvable:$true] %s373
          %379 = dma.hbm_to_vmem [thread:$0]  %s372, 256, %s374, %s357, 128, 128, 8
        $region48: #{tpu_custom_call.1} parent=35 // pred_fallthru
          _
      $region36: #{tpu_custom_call.1} parent=5 // pred_fallthru
        _
      %p380 = scmp.le.s32.totalorder 1, %s23
      %p381 = scmp.lt.s32.totalorder %s23, 5
      %p382 = pnand %p380, %p381
      %p383 = pneg %p382
      // Predicated region
      $region49: #{tpu_custom_call.1} parent=5 // pred_check
        _
      $region50: #{tpu_custom_call.1} parent=5 // pred_check_branch
        %385 = sbr.rel (%p382) target = $region52
      $region51: #{tpu_custom_call.1} parent=5 // pred_region
        %s386 = ssub.s32 %s23, 1
        %s387 = sand.u32 %s50, 1
        %s388 = scalar_lea.sflag [#allocation4], %s387
        %s389 = sand.u32 %s50, 1
        %s390 = smul.addr %s389, 128
        %s391 = scalar_lea.vmem [#allocation3], %s390
        // Predicated region
        $region53: #{tpu_custom_call.1} parent=51 // pred_check
          %p392 = pneg %p63
        $region54: #{tpu_custom_call.1} parent=51 // pred_check_branch
          %394 = sbr.rel (%p392) target = $region56
        $region55: #{tpu_custom_call.1} parent=51 // pred_region
          %395 = dma.done %s388, 2048
        $region56: #{tpu_custom_call.1} parent=51 // pred_fallthru
          _
        %s396 = sand.u32 %s28, 1
        %s397 = scalar_lea.sflag [#allocation7], %s396
        %s398 = sand.u32 %s86, 1
        %s399 = smul.addr %s398, 16
        %s400 = scalar_lea.vmem [#allocation6], %s399
        // Predicated region
        $region57: #{tpu_custom_call.1} parent=51 // pred_check
          %p401 = pneg %p99
        $region58: #{tpu_custom_call.1} parent=51 // pred_check_branch
          %403 = sbr.rel (%p401) target = $region60
        $region59: #{tpu_custom_call.1} parent=51 // pred_region
          %404 = dma.done %s397, 256
        $region60: #{tpu_custom_call.1} parent=51 // pred_fallthru
          _
        %s405 = sand.u32 %s28, 1
        %s406 = scalar_lea.sflag [#allocation7], %s405
        %s407 = sand.u32 %s122, 1
        %s408 = smul.addr %s407, 16
        %s409 = scalar_lea.vmem [#allocation8], %s408
        // Predicated region
        $region61: #{tpu_custom_call.1} parent=51 // pred_check
          %p410 = pneg %p135
        $region62: #{tpu_custom_call.1} parent=51 // pred_check_branch
          %412 = sbr.rel (%p410) target = $region64
        $region63: #{tpu_custom_call.1} parent=51 // pred_region
          %413 = dma.done %s406, 256
        $region64: #{tpu_custom_call.1} parent=51 // pred_fallthru
          _
        %s414 = sand.u32 %s50, 1
        %s415 = scalar_lea.sflag [#allocation4], %s414
        %s416 = sand.u32 %s50, 1
        %s417 = smul.addr %s416, 128
        %s418 = scalar_lea.vmem [#allocation3], %s417
        %p419 = pneg %p63
        %p420 = pneg %p60
        %s421 = sand.u32 %s28, 1
        %s422 = scalar_lea.sflag [#allocation7], %s421
        %s423 = sand.u32 %s86, 1
        %s424 = smul.addr %s423, 16
        %s425 = scalar_lea.vmem [#allocation6], %s424
        %p426 = pneg %p99
        %p427 = pneg %p96
        %s428 = sand.u32 %s28, 1
        %s429 = scalar_lea.sflag [#allocation7], %s428
        %s430 = sand.u32 %s122, 1
        %s431 = smul.addr %s430, 16
        %s432 = scalar_lea.vmem [#allocation8], %s431
        %p433 = pneg %p135
        %p434 = pneg %p132
        %p435 = pneg %p156
        %p436 = pneg %p153
        %p437 = pneg %p177
        %p438 = pneg %p174
        %p439 = pneg %p198
        %p440 = pneg %p195
        %p441 = pneg %p219
        %p442 = pneg %p216
        %p443 = pneg %p240
        %p444 = pneg %p237
        %p445 = pneg %p268
        %p446 = pneg %p265
        %s447 = sand.u32 %s255, 1
        %s448 = scalar_lea.sflag [#allocation5], %s447
        %s449 = sand.u32 %s255, 1
        %s450 = smul.addr %s449, 128
        %s451 = scalar_lea.vmem [#allocation9], %s450
        %s452 = smul.u32 8, %s33
        %s453 = smul.u32 %s33, 8
        %s454 = ssub.s32 %s453, 1
        %p455 = scmp.gt.s32.totalorder %s454, 0
        %s456 = scalar_select %p455, %s454, 0
        %s457 = sadd.s32 %s33, 1
        %s458 = smul.u32 %s457, 8
        %p459 = scmp.lt.s32.totalorder %s458, 15
        %s460 = scalar_select %p459, %s458, 15
        %s461 = smul.u32 8, %s33
        %v463 = vld [vmem:[%s400] sm:$0xff]
        %v464 = vld [vmem:[%s400 + $0x8] sm:$0xff]
        %v465 = vld [vmem:[%s391] sm:$0xff]
        %v466 = vld [vmem:[%s391 + $0x8] sm:$0xff]
        %v467 = vld [vmem:[%s391 + $0x10] sm:$0xff]
        %v468 = vld [vmem:[%s391 + $0x18] sm:$0xff]
        %v469 = vld [vmem:[%s391 + $0x20] sm:$0xff]
        %v470 = vld [vmem:[%s391 + $0x28] sm:$0xff]
        %v471 = vld [vmem:[%s391 + $0x30] sm:$0xff]
        %v472 = vld [vmem:[%s391 + $0x38] sm:$0xff]
        %v473 = vld [vmem:[%s391 + $0x40] sm:$0xff]
        %v474 = vld [vmem:[%s391 + $0x48] sm:$0xff]
        %v475 = vld [vmem:[%s391 + $0x50] sm:$0xff]
        %v476 = vld [vmem:[%s391 + $0x58] sm:$0xff]
        %v477 = vld [vmem:[%s391 + $0x60] sm:$0xff]
        %v478 = vld [vmem:[%s391 + $0x68] sm:$0xff]
        %v479 = vld [vmem:[%s391 + $0x70] sm:$0xff]
        %v480 = vld [vmem:[%s391 + $0x78] sm:$0xff]
        %v481 = vld [vmem:[%s409] sm:$0xff]
        %v482 = vld [vmem:[%s409 + $0x8] sm:$0xff]
        %v483 = vld [vmem:[%s3] sm:$0x1]
        %v485 = vlaneseq
        %v486 = vshrl.u32 %v485, 7
        %v487 = vsub.s32 0, %v486
        %v488 = vrot.slane %v483, %v487
        %v490 = vmul.f32 %v463, %v488
        %v491 = vmul.f32 %v464, %v488
        %v492 = vmul.f32 %v465, %v488
        %v493 = vmul.f32 %v466, %v488
        %v494 = vmul.f32 %v467, %v488
        %v495 = vmul.f32 %v468, %v488
        %v496 = vmul.f32 %v469, %v488
        %v497 = vmul.f32 %v470, %v488
        %v498 = vmul.f32 %v471, %v488
        %v499 = vmul.f32 %v472, %v488
        %v500 = vmul.f32 %v473, %v488
        %v501 = vmul.f32 %v474, %v488
        %v502 = vmul.f32 %v475, %v488
        %v503 = vmul.f32 %v476, %v488
        %v504 = vmul.f32 %v477, %v488
        %v505 = vmul.f32 %v478, %v488
        %v506 = vmul.f32 %v479, %v488
        %v507 = vmul.f32 %v480, %v488
        %v508 = vmul.f32 %v481, %v488
        %v509 = vmul.f32 %v482, %v488
        %v510 = vld [vmem:[%s4] sm:$0x1]
        %v512 = vlaneseq
        %v513 = vshrl.u32 %v512, 7
        %v514 = vsub.s32 0, %v513
        %v515 = vrot.slane %v510, %v514
        %v517 = vadd.f32 %v490, %v515
        %v518 = vadd.f32 %v491, %v515
        %v519 = vadd.f32 %v492, %v515
        %v520 = vadd.f32 %v493, %v515
        %v521 = vadd.f32 %v494, %v515
        %v522 = vadd.f32 %v495, %v515
        %v523 = vadd.f32 %v496, %v515
        %v524 = vadd.f32 %v497, %v515
        %v525 = vadd.f32 %v498, %v515
        %v526 = vadd.f32 %v499, %v515
        %v527 = vadd.f32 %v500, %v515
        %v528 = vadd.f32 %v501, %v515
        %v529 = vadd.f32 %v502, %v515
        %v530 = vadd.f32 %v503, %v515
        %v531 = vadd.f32 %v504, %v515
        %v532 = vadd.f32 %v505, %v515
        %v533 = vadd.f32 %v506, %v515
        %v534 = vadd.f32 %v507, %v515
        %v535 = vadd.f32 %v508, %v515
        %v536 = vadd.f32 %v509, %v515
        %v537 = vmax.f32 %v517, 0.0
        %v538 = vmax.f32 %v518, 0.0
        %v539 = vmax.f32 %v519, 0.0
        %v540 = vmax.f32 %v520, 0.0
        %v541 = vmax.f32 %v521, 0.0
        %v542 = vmax.f32 %v522, 0.0
        %v543 = vmax.f32 %v523, 0.0
        %v544 = vmax.f32 %v524, 0.0
        %v545 = vmax.f32 %v525, 0.0
        %v546 = vmax.f32 %v526, 0.0
        %v547 = vmax.f32 %v527, 0.0
        %v548 = vmax.f32 %v528, 0.0
        %v549 = vmax.f32 %v529, 0.0
        %v550 = vmax.f32 %v530, 0.0
        %v551 = vmax.f32 %v531, 0.0
        %v552 = vmax.f32 %v532, 0.0
        %v553 = vmax.f32 %v533, 0.0
        %v554 = vmax.f32 %v534, 0.0
        %v555 = vmax.f32 %v535, 0.0
        %v556 = vmax.f32 %v536, 0.0
        %v557 = vpack.c.bf16 %v538, %v537
        %v558 = vpack.c.bf16 %v540, %v539
        %v559 = vpack.c.bf16 %v542, %v541
        %v560 = vpack.c.bf16 %v544, %v543
        %v561 = vpack.c.bf16 %v546, %v545
        %v562 = vpack.c.bf16 %v548, %v547
        %v563 = vpack.c.bf16 %v550, %v549
        %v564 = vpack.c.bf16 %v552, %v551
        %v565 = vpack.c.bf16 %v554, %v553
        %v566 = vpack.c.bf16 %v556, %v555
        %v567 = vld [vmem:[%s5] sm:$0xf]
        %v568 = vld [vmem:[%s5 + $0x4] sm:$0xf]
        %v569 = vld [vmem:[%s5 + $0x8] sm:$0xf]
        %v570 = vld [vmem:[%s5 + $0xc] sm:$0xf]
        %v571 = vld [vmem:[%s5 + $0x10] sm:$0xf]
        %v572 = vld [vmem:[%s5 + $0x14] sm:$0xf]
        %v573 = vld [vmem:[%s5 + $0x18] sm:$0xf]
        %v574 = vld [vmem:[%s5 + $0x1c] sm:$0xf]
        %v575 = vld [vmem:[%s6] sm:$0x1]
        %v577 = vlaneseq
        %v578 = vshrl.u32 %v577, 7
        %v579 = vsub.s32 0, %v578
        %v580 = vrot.slane %v575, %v579
        %v590 = vunpack.c.l.b16 %v567
        %v591 = vunpack.c.l.b16 %v568
        %v592 = vunpack.c.l.b16 %v569
        %v593 = vunpack.c.l.b16 %v570
        %v594 = vunpack.c.l.b16 %v571
        %v595 = vunpack.c.l.b16 %v572
        %v596 = vunpack.c.l.b16 %v573
        %v597 = vunpack.c.l.b16 %v574
        %v598 = vpack.c.b16 %v591, %v590
        %v599 = vpack.c.b16 %v593, %v592
        %v600 = vpack.c.b16 %v595, %v594
        %v601 = vpack.c.b16 %v597, %v596
        %vm606 = vcmask 523264
        %v608 = vsel %vm606, %v557, 0
        %v611 = vsel %vm606, %v558, 0
        %v614 = vsel %vm606, %v559, 0
        %v617 = vsel %vm606, %v560, 0
        %v620 = vsel %vm606, %v561, 0
        %v623 = vsel %vm606, %v562, 0
        %v626 = vsel %vm606, %v563, 0
        %v629 = vsel %vm606, %v564, 0
        %v632 = vsel %vm606, %v565, 0
        %v635 = vsel %vm606, %v566, 0
        %637 = vmatprep.subr.bf16.mxu0 0
        %638 = vmatpush1.bf16.msra.mxu0 0
        %639 = vmatprep.subr.bf16.mxu0 0
        %640 = vmatpush1.bf16.msra.mxu0 0
        %641 = vmatprep.subr.bf16.mxu0 0
        %642 = vmatpush1.bf16.msra.mxu0 0
        %643 = vmatprep.subr.bf16.mxu0 0
        %644 = vmatpush1.bf16.msra.mxu0 0
        %645 = vmatprep.subr.bf16.mxu0 0
        %646 = vmatpush1.bf16.msra.mxu0 %v601
        %647 = vmatprep.subr.bf16.mxu0 0
        %648 = vmatpush1.bf16.msra.mxu0 %v600
        %649 = vmatprep.subr.bf16.mxu0 0
        %650 = vmatpush1.bf16.msra.mxu0 %v599
        %651 = vmatprep.subr.bf16.mxu0 0
        %652 = vmatpush1.bf16.msra.mxu0 %v598
        %653 = vmatprep.subr.bf16.mxu0 0
        %654 = vmatpush2.bf16.msra.mxu0 0
        %655 = vmatprep.subr.bf16.mxu0 0
        %656 = vmatpush2.bf16.msra.mxu0 0
        %657 = vmatprep.subr.bf16.mxu0 0
        %658 = vmatpush2.bf16.msra.mxu0 0
        %659 = vmatprep.subr.bf16.mxu0 0
        %660 = vmatpush2.bf16.msra.mxu0 0
        %661 = vmatprep.subr.bf16.mxu0 0
        %662 = vmatpush2.bf16.msra.mxu0 0
        %663 = vmatprep.subr.bf16.mxu0 0
        %664 = vmatpush2.bf16.msra.mxu0 0
        %665 = vmatprep.subr.bf16.mxu0 0
        %666 = vmatpush2.bf16.msra.mxu0 0
        %667 = vmatprep.subr.bf16.mxu0 0
        %668 = vmatpush2.bf16.msra.mxu0 0
        %669 = vmatprep.mubr.bf16.mxu0 0
        %670 = vmatmul.mubr.bf16.gmra.mxu0 %v608
        %v671 = vpop.f32.mrf.mxu0
        %v672 = vadd.f32 %v580, %v671
        %v673 = vpop.f32.mrf.mxu0
        %v674 = vpop.f32.mrf.mxu0
        %v675 = vadd.f32 %v580, %v674
        %v676 = vpop.f32.mrf.mxu0
        %677 = vmatprep.mubr.bf16.mxu0 0
        %678 = vmatmul.mubr.bf16.gmra.mxu0 %v611
        %v679 = vpop.f32.mrf.mxu0
        %v680 = vadd.f32 %v580, %v679
        %v681 = vpop.f32.mrf.mxu0
        %v682 = vpop.f32.mrf.mxu0
        %v683 = vadd.f32 %v580, %v682
        %v684 = vpop.f32.mrf.mxu0
        %685 = vmatprep.mubr.bf16.mxu0 0
        %686 = vmatmul.mubr.bf16.gmra.mxu0 %v614
        %v687 = vpop.f32.mrf.mxu0
        %v688 = vadd.f32 %v580, %v687
        %v689 = vpop.f32.mrf.mxu0
        %v690 = vpop.f32.mrf.mxu0
        %v691 = vadd.f32 %v580, %v690
        %v692 = vpop.f32.mrf.mxu0
        %693 = vmatprep.mubr.bf16.mxu0 0
        %694 = vmatmul.mubr.bf16.gmra.mxu0 %v617
        %v695 = vpop.f32.mrf.mxu0
        %v696 = vadd.f32 %v580, %v695
        %v697 = vpop.f32.mrf.mxu0
        %v698 = vpop.f32.mrf.mxu0
        %v699 = vadd.f32 %v580, %v698
        %v700 = vpop.f32.mrf.mxu0
        %701 = vmatprep.mubr.bf16.mxu0 0
        %702 = vmatmul.mubr.bf16.gmra.mxu0 %v620
        %v703 = vpop.f32.mrf.mxu0
        %v704 = vadd.f32 %v580, %v703
        %v705 = vpop.f32.mrf.mxu0
        %v706 = vpop.f32.mrf.mxu0
        %v707 = vadd.f32 %v580, %v706
        %v708 = vpop.f32.mrf.mxu0
        %709 = vmatprep.mubr.bf16.mxu0 0
        %710 = vmatmul.mubr.bf16.gmra.mxu0 %v623
        %v711 = vpop.f32.mrf.mxu0
        %v712 = vadd.f32 %v580, %v711
        %v713 = vpop.f32.mrf.mxu0
        %v714 = vpop.f32.mrf.mxu0
        %v715 = vadd.f32 %v580, %v714
        %v716 = vpop.f32.mrf.mxu0
        %717 = vmatprep.mubr.bf16.mxu0 0
        %718 = vmatmul.mubr.bf16.gmra.mxu0 %v626
        %v719 = vpop.f32.mrf.mxu0
        %v720 = vadd.f32 %v580, %v719
        %v721 = vpop.f32.mrf.mxu0
        %v722 = vpop.f32.mrf.mxu0
        %v723 = vadd.f32 %v580, %v722
        %v724 = vpop.f32.mrf.mxu0
        %725 = vmatprep.mubr.bf16.mxu0 0
        %726 = vmatmul.mubr.bf16.gmra.mxu0 %v629
        %v727 = vpop.f32.mrf.mxu0
        %v728 = vadd.f32 %v580, %v727
        %v729 = vpop.f32.mrf.mxu0
        %v730 = vpop.f32.mrf.mxu0
        %v731 = vadd.f32 %v580, %v730
        %v732 = vpop.f32.mrf.mxu0
        %733 = vmatprep.mubr.bf16.mxu0 0
        %734 = vmatmul.mubr.bf16.gmra.mxu0 %v632
        %v735 = vpop.f32.mrf.mxu0
        %v736 = vadd.f32 %v580, %v735
        %v737 = vpop.f32.mrf.mxu0
        %v738 = vpop.f32.mrf.mxu0
        %v739 = vadd.f32 %v580, %v738
        %v740 = vpop.f32.mrf.mxu0
        %741 = vmatprep.mubr.bf16.mxu0 0
        %742 = vmatmul.mubr.bf16.gmra.mxu0 %v635
        %v743 = vpop.f32.mrf.mxu0
        %v744 = vadd.f32 %v580, %v743
        %v745 = vpop.f32.mrf.mxu0
        %v746 = vpop.f32.mrf.mxu0
        %v747 = vadd.f32 %v580, %v746
        %v748 = vpop.f32.mrf.mxu0
        %749 = vdwg.mxu0
        %v750 = vmax.f32 %v672, 0.0
        %v751 = vmax.f32 %v675, 0.0
        %v752 = vmax.f32 %v680, 0.0
        %v753 = vmax.f32 %v683, 0.0
        %v754 = vmax.f32 %v688, 0.0
        %v755 = vmax.f32 %v691, 0.0
        %v756 = vmax.f32 %v696, 0.0
        %v757 = vmax.f32 %v699, 0.0
        %v758 = vmax.f32 %v704, 0.0
        %v759 = vmax.f32 %v707, 0.0
        %v760 = vmax.f32 %v712, 0.0
        %v761 = vmax.f32 %v715, 0.0
        %v762 = vmax.f32 %v720, 0.0
        %v763 = vmax.f32 %v723, 0.0
        %v764 = vmax.f32 %v728, 0.0
        %v765 = vmax.f32 %v731, 0.0
        %v766 = vmax.f32 %v736, 0.0
        %v767 = vmax.f32 %v739, 0.0
        %v768 = vmax.f32 %v744, 0.0
        %v769 = vmax.f32 %v747, 0.0
        %v770 = vpack.c.bf16 %v751, %v750
        %v771 = vpack.c.bf16 %v753, %v752
        %v772 = vpack.c.bf16 %v755, %v754
        %v773 = vpack.c.bf16 %v757, %v756
        %v774 = vpack.c.bf16 %v759, %v758
        %v775 = vpack.c.bf16 %v761, %v760
        %v776 = vpack.c.bf16 %v763, %v762
        %v777 = vpack.c.bf16 %v765, %v764
        %v778 = vpack.c.bf16 %v767, %v766
        %v779 = vpack.c.bf16 %v769, %v768
        %v790 = vunpack.c.l.b16 %v770
        %v791 = vunpack.c.h.b16 %v770
        %v792 = vunpack.c.l.b16 %v771
        %v793 = vunpack.c.h.b16 %v771
        %v794 = vunpack.c.l.b16 %v772
        %v795 = vunpack.c.h.b16 %v772
        %v796 = vunpack.c.l.b16 %v773
        %v797 = vunpack.c.h.b16 %v773
        %v798 = vunpack.c.l.b16 %v774
        %v799 = vunpack.c.h.b16 %v774
        %v800 = vunpack.c.l.b16 %v775
        %v801 = vunpack.c.h.b16 %v775
        %v802 = vunpack.c.l.b16 %v776
        %v803 = vunpack.c.h.b16 %v776
        %v804 = vunpack.c.l.b16 %v777
        %v805 = vunpack.c.h.b16 %v777
        %v806 = vunpack.c.l.b16 %v778
        %v807 = vunpack.c.h.b16 %v778
        %v808 = vunpack.c.l.b16 %v779
        %v809 = vunpack.c.h.b16 %v779
        %v810 = vpack.c.b16 %v790, %v790
        %v811 = vpack.c.b16 %v791, %v791
        %v812 = vpack.c.b16 %v792, %v792
        %v813 = vpack.c.b16 %v793, %v793
        %v814 = vpack.c.b16 %v794, %v794
        %v815 = vpack.c.b16 %v795, %v795
        %v816 = vpack.c.b16 %v796, %v796
        %v817 = vpack.c.b16 %v797, %v797
        %v818 = vpack.c.b16 %v798, %v798
        %v819 = vpack.c.b16 %v799, %v799
        %v820 = vpack.c.b16 %v800, %v800
        %v821 = vpack.c.b16 %v801, %v801
        %v822 = vpack.c.b16 %v802, %v802
        %v823 = vpack.c.b16 %v803, %v803
        %v824 = vpack.c.b16 %v804, %v804
        %v825 = vpack.c.b16 %v805, %v805
        %v826 = vpack.c.b16 %v806, %v806
        %v827 = vpack.c.b16 %v807, %v807
        %v828 = vpack.c.b16 %v808, %v808
        %v829 = vpack.c.b16 %v809, %v809
        %850 = vst [vmem:[#allocation2] sm:$0xf] %v810
        %851 = vst [vmem:[#allocation2 + $0x4] sm:$0xf] %v811
        %852 = vst [vmem:[#allocation2 + $0x8] sm:$0xf] %v812
        %853 = vst [vmem:[#allocation2 + $0xc] sm:$0xf] %v813
        %854 = vst [vmem:[#allocation2 + $0x10] sm:$0xf] %v814
        %855 = vst [vmem:[#allocation2 + $0x14] sm:$0xf] %v815
        %856 = vst [vmem:[#allocation2 + $0x18] sm:$0xf] %v816
        %857 = vst [vmem:[#allocation2 + $0x1c] sm:$0xf] %v817
        %858 = vst [vmem:[#allocation2 + $0x20] sm:$0xf] %v818
        %859 = vst [vmem:[#allocation2 + $0x24] sm:$0xf] %v819
        %860 = vst [vmem:[#allocation2 + $0x28] sm:$0xf] %v820
        %861 = vst [vmem:[#allocation2 + $0x2c] sm:$0xf] %v821
        %862 = vst [vmem:[#allocation2 + $0x30] sm:$0xf] %v822
        %863 = vst [vmem:[#allocation2 + $0x34] sm:$0xf] %v823
        %864 = vst [vmem:[#allocation2 + $0x38] sm:$0xf] %v824
        %865 = vst [vmem:[#allocation2 + $0x3c] sm:$0xf] %v825
        %866 = vst [vmem:[#allocation2 + $0x40] sm:$0xf] %v826
        %867 = vst [vmem:[#allocation2 + $0x44] sm:$0xf] %v827
        %868 = vst [vmem:[#allocation2 + $0x48] sm:$0xf] %v828
        %869 = vst [vmem:[#allocation2 + $0x4c] sm:$0xf] %v829
        %p870 = scmp.eq.s32.totalorder %s33, 0
        // Predicated region
        $region65: #{tpu_custom_call.1} parent=51 // pred_check
          %p871 = pneg %p870
        $region66: #{tpu_custom_call.1} parent=51 // pred_check_branch
          %873 = sbr.rel (%p871) target = $region68
        $region67: #{tpu_custom_call.1} parent=51 // pred_region
          %874 = vst [vmem:[#allocation2] sm:$0xf] 0
          %875 = vst [vmem:[#allocation2 + $0x4] sm:$0xf] 0
        $region68: #{tpu_custom_call.1} parent=51 // pred_fallthru
          _
        %p876 = scmp.eq.s32.totalorder %s33, 1
        // Predicated region
        $region69: #{tpu_custom_call.1} parent=51 // pred_check
          %p877 = pneg %p876
        $region70: #{tpu_custom_call.1} parent=51 // pred_check_branch
          %879 = sbr.rel (%p877) target = $region72
        $region71: #{tpu_custom_call.1} parent=51 // pred_region
          %s880 = scalar_lea.vmem [#allocation2], 72
          %881 = vst [vmem:[%s880] sm:$0xf] 0
          %882 = vst [vmem:[%s880 + $0x4] sm:$0xf] 0
        $region72: #{tpu_custom_call.1} parent=51 // pred_fallthru
          _
        %v883 = vlaneseq
        %v884 = vshrl.u32 %v883, 7
        %v885 = vadd.s32 %v884, 8
        %v886 = vld [vmem:[#allocation2] sm:$0xf]
        %v887 = vld [vmem:[#allocation2 + $0x4] sm:$0xf]
        %v888 = vld [vmem:[#allocation2 + $0x8] sm:$0xf]
        %v889 = vld [vmem:[#allocation2 + $0xc] sm:$0xf]
        %v890 = vld [vmem:[#allocation2 + $0x10] sm:$0xf]
        %v891 = vld [vmem:[#allocation2 + $0x14] sm:$0xf]
        %v892 = vld [vmem:[#allocation2 + $0x18] sm:$0xf]
        %v893 = vld [vmem:[#allocation2 + $0x1c] sm:$0xf]
        %v894 = vld [vmem:[#allocation2 + $0x20] sm:$0xf]
        %v895 = vld [vmem:[#allocation2 + $0x24] sm:$0xf]
        %v896 = vld [vmem:[#allocation2 + $0x28] sm:$0xf]
        %v897 = vld [vmem:[#allocation2 + $0x2c] sm:$0xf]
        %v898 = vld [vmem:[#allocation2 + $0x30] sm:$0xf]
        %v899 = vld [vmem:[#allocation2 + $0x34] sm:$0xf]
        %v900 = vld [vmem:[#allocation2 + $0x38] sm:$0xf]
        %v901 = vld [vmem:[#allocation2 + $0x3c] sm:$0xf]
        %v902 = vld [vmem:[%s7] sm:$0xf]
        %v903 = vld [vmem:[%s7 + $0x4] sm:$0xf]
        %v904 = vld [vmem:[%s7 + $0x8] sm:$0xf]
        %v905 = vld [vmem:[%s7 + $0xc] sm:$0xf]
        %v906 = vld [vmem:[%s7 + $0x10] sm:$0xf]
        %v907 = vld [vmem:[%s7 + $0x14] sm:$0xf]
        %v908 = vld [vmem:[%s7 + $0x18] sm:$0xf]
        %v909 = vld [vmem:[%s7 + $0x1c] sm:$0xf]
        %v910 = vld [vmem:[%s7 + $0x20] sm:$0xf]
        %v911 = vld [vmem:[%s7 + $0x24] sm:$0xf]
        %v912 = vld [vmem:[%s7 + $0x28] sm:$0xf]
        %v913 = vld [vmem:[%s7 + $0x2c] sm:$0xf]
        %v914 = vld [vmem:[%s7 + $0x30] sm:$0xf]
        %v915 = vld [vmem:[%s7 + $0x34] sm:$0xf]
        %v916 = vld [vmem:[%s7 + $0x38] sm:$0xf]
        %v917 = vld [vmem:[%s7 + $0x3c] sm:$0xf]
        %v934 = vunpack.c.l.b16 %v886
        %v935 = vunpack.c.l.b16 %v887
        %v936 = vunpack.c.l.b16 %v888
        %v937 = vunpack.c.l.b16 %v889
        %v938 = vunpack.c.l.b16 %v890
        %v939 = vunpack.c.l.b16 %v891
        %v940 = vunpack.c.l.b16 %v892
        %v941 = vunpack.c.l.b16 %v893
        %v942 = vunpack.c.l.b16 %v894
        %v943 = vunpack.c.l.b16 %v895
        %v944 = vunpack.c.l.b16 %v896
        %v945 = vunpack.c.l.b16 %v897
        %v946 = vunpack.c.l.b16 %v898
        %v947 = vunpack.c.l.b16 %v899
        %v948 = vunpack.c.l.b16 %v900
        %v949 = vunpack.c.l.b16 %v901
        %v950 = vpack.c.b16 %v935, %v934
        %v951 = vpack.c.b16 %v937, %v936
        %v952 = vpack.c.b16 %v939, %v938
        %v953 = vpack.c.b16 %v941, %v940
        %v954 = vpack.c.b16 %v943, %v942
        %v955 = vpack.c.b16 %v945, %v944
        %v956 = vpack.c.b16 %v947, %v946
        %v957 = vpack.c.b16 %v949, %v948
        %v982 = vunpack.c.l.b16 %v902
        %v983 = vunpack.c.l.b16 %v903
        %v984 = vunpack.c.l.b16 %v904
        %v985 = vunpack.c.l.b16 %v905
        %v986 = vunpack.c.l.b16 %v906
        %v987 = vunpack.c.l.b16 %v907
        %v988 = vunpack.c.l.b16 %v908
        %v989 = vunpack.c.l.b16 %v909
        %v990 = vunpack.c.l.b16 %v910
        %v991 = vunpack.c.l.b16 %v911
        %v992 = vunpack.c.l.b16 %v912
        %v993 = vunpack.c.l.b16 %v913
        %v994 = vunpack.c.l.b16 %v914
        %v995 = vunpack.c.l.b16 %v915
        %v996 = vunpack.c.l.b16 %v916
        %v997 = vunpack.c.l.b16 %v917
        %v998 = vpack.c.b16 %v983, %v982
        %v999 = vpack.c.b16 %v985, %v984
        %v1000 = vpack.c.b16 %v987, %v986
        %v1001 = vpack.c.b16 %v989, %v988
        %v1002 = vpack.c.b16 %v991, %v990
        %v1003 = vpack.c.b16 %v993, %v992
        %v1004 = vpack.c.b16 %v995, %v994
        %v1005 = vpack.c.b16 %v997, %v996
        %1014 = vmatprep.subr.bf16.mxu0 0
        %1015 = vmatpush1.bf16.msra.mxu0 %v1005
        %1016 = vmatprep.subr.bf16.mxu0 0
        %1017 = vmatpush1.bf16.msra.mxu0 %v1004
        %1018 = vmatprep.subr.bf16.mxu0 0
        %1019 = vmatpush1.bf16.msra.mxu0 %v1003
        %1020 = vmatprep.subr.bf16.mxu0 0
        %1021 = vmatpush1.bf16.msra.mxu0 %v1002
        %1022 = vmatprep.subr.bf16.mxu0 0
        %1023 = vmatpush1.bf16.msra.mxu0 %v1001
        %1024 = vmatprep.subr.bf16.mxu0 0
        %1025 = vmatpush1.bf16.msra.mxu0 %v1000
        %1026 = vmatprep.subr.bf16.mxu0 0
        %1027 = vmatpush1.bf16.msra.mxu0 %v999
        %1028 = vmatprep.subr.bf16.mxu0 0
        %1029 = vmatpush1.bf16.msra.mxu0 %v998
        %1030 = vmatprep.subr.bf16.mxu0 0
        %1031 = vmatpush2.bf16.msra.mxu0 0
        %1032 = vmatprep.subr.bf16.mxu0 0
        %1033 = vmatpush2.bf16.msra.mxu0 0
        %1034 = vmatprep.subr.bf16.mxu0 0
        %1035 = vmatpush2.bf16.msra.mxu0 0
        %1036 = vmatprep.subr.bf16.mxu0 0
        %1037 = vmatpush2.bf16.msra.mxu0 0
        %1038 = vmatprep.subr.bf16.mxu0 0
        %1039 = vmatpush2.bf16.msra.mxu0 0
        %1040 = vmatprep.subr.bf16.mxu0 0
        %1041 = vmatpush2.bf16.msra.mxu0 0
        %1042 = vmatprep.subr.bf16.mxu0 0
        %1043 = vmatpush2.bf16.msra.mxu0 0
        %1044 = vmatprep.subr.bf16.mxu0 0
        %1045 = vmatpush2.bf16.msra.mxu0 0
        %1046 = vmatprep.mubr.bf16.mxu0 0
        %1047 = vmatmul.mubr.bf16.gmra.mxu0 %v950
        %v1048 = vpop.f32.mrf.mxu0
        %v1049 = vadd.f32 0.0, %v1048
        %v1050 = vpop.f32.mrf.mxu0
        %v1051 = vpop.f32.mrf.mxu0
        %v1052 = vadd.f32 0.0, %v1051
        %v1053 = vpop.f32.mrf.mxu0
        %1054 = vmatprep.mubr.bf16.mxu0 0
        %1055 = vmatmul.mubr.bf16.gmra.mxu0 %v951
        %v1056 = vpop.f32.mrf.mxu0
        %v1057 = vadd.f32 0.0, %v1056
        %v1058 = vpop.f32.mrf.mxu0
        %v1059 = vpop.f32.mrf.mxu0
        %v1060 = vadd.f32 0.0, %v1059
        %v1061 = vpop.f32.mrf.mxu0
        %1062 = vmatprep.mubr.bf16.mxu0 0
        %1063 = vmatmul.mubr.bf16.gmra.mxu0 %v952
        %v1064 = vpop.f32.mrf.mxu0
        %v1065 = vadd.f32 0.0, %v1064
        %v1066 = vpop.f32.mrf.mxu0
        %v1067 = vpop.f32.mrf.mxu0
        %v1068 = vadd.f32 0.0, %v1067
        %v1069 = vpop.f32.mrf.mxu0
        %1070 = vmatprep.mubr.bf16.mxu0 0
        %1071 = vmatmul.mubr.bf16.gmra.mxu0 %v953
        %v1072 = vpop.f32.mrf.mxu0
        %v1073 = vadd.f32 0.0, %v1072
        %v1074 = vpop.f32.mrf.mxu0
        %v1075 = vpop.f32.mrf.mxu0
        %v1076 = vadd.f32 0.0, %v1075
        %v1077 = vpop.f32.mrf.mxu0
        %1078 = vmatprep.mubr.bf16.mxu0 0
        %1079 = vmatmul.mubr.bf16.gmra.mxu0 %v954
        %v1080 = vpop.f32.mrf.mxu0
        %v1081 = vadd.f32 0.0, %v1080
        %v1082 = vpop.f32.mrf.mxu0
        %v1083 = vpop.f32.mrf.mxu0
        %v1084 = vadd.f32 0.0, %v1083
        %v1085 = vpop.f32.mrf.mxu0
        %1086 = vmatprep.mubr.bf16.mxu0 0
        %1087 = vmatmul.mubr.bf16.gmra.mxu0 %v955
        %v1088 = vpop.f32.mrf.mxu0
        %v1089 = vadd.f32 0.0, %v1088
        %v1090 = vpop.f32.mrf.mxu0
        %v1091 = vpop.f32.mrf.mxu0
        %v1092 = vadd.f32 0.0, %v1091
        %v1093 = vpop.f32.mrf.mxu0
        %1094 = vmatprep.mubr.bf16.mxu0 0
        %1095 = vmatmul.mubr.bf16.gmra.mxu0 %v956
        %v1096 = vpop.f32.mrf.mxu0
        %v1097 = vadd.f32 0.0, %v1096
        %v1098 = vpop.f32.mrf.mxu0
        %v1099 = vpop.f32.mrf.mxu0
        %v1100 = vadd.f32 0.0, %v1099
        %v1101 = vpop.f32.mrf.mxu0
        %1102 = vmatprep.mubr.bf16.mxu0 0
        %1103 = vmatmul.mubr.bf16.gmra.mxu0 %v957
        %v1104 = vpop.f32.mrf.mxu0
        %v1105 = vadd.f32 0.0, %v1104
        %v1106 = vpop.f32.mrf.mxu0
        %v1107 = vpop.f32.mrf.mxu0
        %v1108 = vadd.f32 0.0, %v1107
        %v1109 = vpop.f32.mrf.mxu0
        %1110 = vdwg.mxu0
        %v1111 = vrot.slane %v1049, 7
        %v1112 = vrot.slane %v1057, 7
        %v1113 = vrot.slane %v1065, 7
        %v1114 = vrot.slane %v1073, 7
        %v1115 = vrot.slane %v1081, 7
        %v1116 = vrot.slane %v1089, 7
        %v1117 = vrot.slane %v1097, 7
        %v1118 = vrot.slane %v1105, 7
        %v1119 = vrot.slane %v1052, 7
        %v1120 = vrot.slane %v1060, 7
        %v1121 = vrot.slane %v1068, 7
        %v1122 = vrot.slane %v1076, 7
        %v1123 = vrot.slane %v1084, 7
        %v1124 = vrot.slane %v1092, 7
        %v1125 = vrot.slane %v1100, 7
        %v1126 = vrot.slane %v1108, 7
        %vm1127 = vcmp.lt.s32.totalorder %v884, 1
        %v1128 = vsel %vm1127, %v1111, %v1119
        %v1129 = vsel %vm1127, %v1112, %v1120
        %v1130 = vsel %vm1127, %v1113, %v1121
        %v1131 = vsel %vm1127, %v1114, %v1122
        %v1132 = vsel %vm1127, %v1115, %v1123
        %v1133 = vsel %vm1127, %v1116, %v1124
        %v1134 = vsel %vm1127, %v1117, %v1125
        %v1135 = vsel %vm1127, %v1118, %v1126
        %v1136 = vsel %vm1127, %v1119, %v1111
        %v1137 = vsel %vm1127, %v1120, %v1112
        %v1138 = vsel %vm1127, %v1121, %v1113
        %v1139 = vsel %vm1127, %v1122, %v1114
        %v1140 = vsel %vm1127, %v1123, %v1115
        %v1141 = vsel %vm1127, %v1124, %v1116
        %v1142 = vsel %vm1127, %v1125, %v1117
        %v1143 = vsel %vm1127, %v1126, %v1118
        %vm1144 = vcmp.ge.s32.totalorder %v884, 1
        %vm1145 = vcmp.ge.s32.totalorder %v885, 1
        %v1146 = vsel %vm1144, %v1136, 0.0
        %v1147 = vsel %vm1145, %v1128, 0.0
        %v1148 = vsel %vm1144, %v1137, 0.0
        %v1149 = vsel %vm1145, %v1129, 0.0
        %v1150 = vsel %vm1144, %v1138, 0.0
        %v1151 = vsel %vm1145, %v1130, 0.0
        %v1152 = vsel %vm1144, %v1139, 0.0
        %v1153 = vsel %vm1145, %v1131, 0.0
        %v1154 = vsel %vm1144, %v1140, 0.0
        %v1155 = vsel %vm1145, %v1132, 0.0
        %v1156 = vsel %vm1144, %v1141, 0.0
        %v1157 = vsel %vm1145, %v1133, 0.0
        %v1158 = vsel %vm1144, %v1142, 0.0
        %v1159 = vsel %vm1145, %v1134, 0.0
        %v1160 = vsel %vm1144, %v1143, 0.0
        %v1161 = vsel %vm1145, %v1135, 0.0
        %v1162 = vadd.f32 %v1146, 0.0
        %v1163 = vadd.f32 %v1147, 0.0
        %v1164 = vadd.f32 %v1148, 0.0
        %v1165 = vadd.f32 %v1149, 0.0
        %v1166 = vadd.f32 %v1150, 0.0
        %v1167 = vadd.f32 %v1151, 0.0
        %v1168 = vadd.f32 %v1152, 0.0
        %v1169 = vadd.f32 %v1153, 0.0
        %v1170 = vadd.f32 %v1154, 0.0
        %v1171 = vadd.f32 %v1155, 0.0
        %v1172 = vadd.f32 %v1156, 0.0
        %v1173 = vadd.f32 %v1157, 0.0
        %v1174 = vadd.f32 %v1158, 0.0
        %v1175 = vadd.f32 %v1159, 0.0
        %v1176 = vadd.f32 %v1160, 0.0
        %v1177 = vadd.f32 %v1161, 0.0
        %1194 = vrot.lane.b32.xlu0 %v1049, 96
        %v1195 = vpop.permute.xlu0 %1194
        %1196 = vrot.lane.b32.xlu0 %v1052, 96
        %v1197 = vpop.permute.xlu0 %1196
        %1198 = vrot.lane.b32.xlu0 %v1057, 96
        %v1199 = vpop.permute.xlu0 %1198
        %1200 = vrot.lane.b32.xlu0 %v1060, 96
        %v1201 = vpop.permute.xlu0 %1200
        %1202 = vrot.lane.b32.xlu0 %v1065, 96
        %v1203 = vpop.permute.xlu0 %1202
        %1204 = vrot.lane.b32.xlu0 %v1068, 96
        %v1205 = vpop.permute.xlu0 %1204
        %1206 = vrot.lane.b32.xlu0 %v1073, 96
        %v1207 = vpop.permute.xlu0 %1206
        %1208 = vrot.lane.b32.xlu0 %v1076, 96
        %v1209 = vpop.permute.xlu0 %1208
        %1210 = vrot.lane.b32.xlu0 %v1081, 96
        %v1211 = vpop.permute.xlu0 %1210
        %1212 = vrot.lane.b32.xlu0 %v1084, 96
        %v1213 = vpop.permute.xlu0 %1212
        %1214 = vrot.lane.b32.xlu0 %v1089, 96
        %v1215 = vpop.permute.xlu0 %1214
        %1216 = vrot.lane.b32.xlu0 %v1092, 96
        %v1217 = vpop.permute.xlu0 %1216
        %1218 = vrot.lane.b32.xlu0 %v1097, 96
        %v1219 = vpop.permute.xlu0 %1218
        %1220 = vrot.lane.b32.xlu0 %v1100, 96
        %v1221 = vpop.permute.xlu0 %1220
        %1222 = vrot.lane.b32.xlu0 %v1105, 96
        %v1223 = vpop.permute.xlu0 %1222
        %1224 = vrot.lane.b32.xlu0 %v1108, 96
        %v1225 = vpop.permute.xlu0 %1224
        %v1242 = vadd.f32 %v1162, %v1195
        %v1243 = vadd.f32 %v1163, %v1197
        %v1244 = vadd.f32 %v1164, %v1199
        %v1245 = vadd.f32 %v1165, %v1201
        %v1246 = vadd.f32 %v1166, %v1203
        %v1247 = vadd.f32 %v1167, %v1205
        %v1248 = vadd.f32 %v1168, %v1207
        %v1249 = vadd.f32 %v1169, %v1209
        %v1250 = vadd.f32 %v1170, %v1211
        %v1251 = vadd.f32 %v1171, %v1213
        %v1252 = vadd.f32 %v1172, %v1215
        %v1253 = vadd.f32 %v1173, %v1217
        %v1254 = vadd.f32 %v1174, %v1219
        %v1255 = vadd.f32 %v1175, %v1221
        %v1256 = vadd.f32 %v1176, %v1223
        %v1257 = vadd.f32 %v1177, %v1225
        %1258 = vrot.lane.b32.xlu0 %v1049, 64
        %v1259 = vpop.permute.xlu0 %1258
        %1260 = vrot.lane.b32.xlu0 %v1052, 64
        %v1261 = vpop.permute.xlu0 %1260
        %1262 = vrot.lane.b32.xlu0 %v1057, 64
        %v1263 = vpop.permute.xlu0 %1262
        %1264 = vrot.lane.b32.xlu0 %v1060, 64
        %v1265 = vpop.permute.xlu0 %1264
        %1266 = vrot.lane.b32.xlu0 %v1065, 64
        %v1267 = vpop.permute.xlu0 %1266
        %1268 = vrot.lane.b32.xlu0 %v1068, 64
        %v1269 = vpop.permute.xlu0 %1268
        %1270 = vrot.lane.b32.xlu0 %v1073, 64
        %v1271 = vpop.permute.xlu0 %1270
        %1272 = vrot.lane.b32.xlu0 %v1076, 64
        %v1273 = vpop.permute.xlu0 %1272
        %1274 = vrot.lane.b32.xlu0 %v1081, 64
        %v1275 = vpop.permute.xlu0 %1274
        %1276 = vrot.lane.b32.xlu0 %v1084, 64
        %v1277 = vpop.permute.xlu0 %1276
        %1278 = vrot.lane.b32.xlu0 %v1089, 64
        %v1279 = vpop.permute.xlu0 %1278
        %1280 = vrot.lane.b32.xlu0 %v1092, 64
        %v1281 = vpop.permute.xlu0 %1280
        %1282 = vrot.lane.b32.xlu0 %v1097, 64
        %v1283 = vpop.permute.xlu0 %1282
        %1284 = vrot.lane.b32.xlu0 %v1100, 64
        %v1285 = vpop.permute.xlu0 %1284
        %1286 = vrot.lane.b32.xlu0 %v1105, 64
        %v1287 = vpop.permute.xlu0 %1286
        %1288 = vrot.lane.b32.xlu0 %v1108, 64
        %v1289 = vpop.permute.xlu0 %1288
        %v1306 = vrot.slane %v1259, 1
        %v1307 = vrot.slane %v1263, 1
        %v1308 = vrot.slane %v1267, 1
        %v1309 = vrot.slane %v1271, 1
        %v1310 = vrot.slane %v1275, 1
        %v1311 = vrot.slane %v1279, 1
        %v1312 = vrot.slane %v1283, 1
        %v1313 = vrot.slane %v1287, 1
        %v1314 = vrot.slane %v1261, 1
        %v1315 = vrot.slane %v1265, 1
        %v1316 = vrot.slane %v1269, 1
        %v1317 = vrot.slane %v1273, 1
        %v1318 = vrot.slane %v1277, 1
        %v1319 = vrot.slane %v1281, 1
        %v1320 = vrot.slane %v1285, 1
        %v1321 = vrot.slane %v1289, 1
        %vm1322 = vcmp.lt.s32.totalorder %v884, 7
        %v1323 = vsel %vm1322, %v1306, %v1314
        %v1324 = vsel %vm1322, %v1307, %v1315
        %v1325 = vsel %vm1322, %v1308, %v1316
        %v1326 = vsel %vm1322, %v1309, %v1317
        %v1327 = vsel %vm1322, %v1310, %v1318
        %v1328 = vsel %vm1322, %v1311, %v1319
        %v1329 = vsel %vm1322, %v1312, %v1320
        %v1330 = vsel %vm1322, %v1313, %v1321
        %v1331 = vsel %vm1322, %v1314, %v1306
        %v1332 = vsel %vm1322, %v1315, %v1307
        %v1333 = vsel %vm1322, %v1316, %v1308
        %v1334 = vsel %vm1322, %v1317, %v1309
        %v1335 = vsel %vm1322, %v1318, %v1310
        %v1336 = vsel %vm1322, %v1319, %v1311
        %v1337 = vsel %vm1322, %v1320, %v1312
        %v1338 = vsel %vm1322, %v1321, %v1313
        %vm1339 = vcmp.le.s32.totalorder %v884, 14
        %vm1340 = vcmp.le.s32.totalorder %v885, 14
        %v1341 = vsel %vm1339, %v1323, 0.0
        %v1342 = vsel %vm1340, %v1331, 0.0
        %v1343 = vsel %vm1339, %v1324, 0.0
        %v1344 = vsel %vm1340, %v1332, 0.0
        %v1345 = vsel %vm1339, %v1325, 0.0
        %v1346 = vsel %vm1340, %v1333, 0.0
        %v1347 = vsel %vm1339, %v1326, 0.0
        %v1348 = vsel %vm1340, %v1334, 0.0
        %v1349 = vsel %vm1339, %v1327, 0.0
        %v1350 = vsel %vm1340, %v1335, 0.0
        %v1351 = vsel %vm1339, %v1328, 0.0
        %v1352 = vsel %vm1340, %v1336, 0.0
        %v1353 = vsel %vm1339, %v1329, 0.0
        %v1354 = vsel %vm1340, %v1337, 0.0
        %v1355 = vsel %vm1339, %v1330, 0.0
        %v1356 = vsel %vm1340, %v1338, 0.0
        %v1357 = vadd.f32 %v1242, %v1341
        %v1358 = vadd.f32 %v1243, %v1342
        %v1359 = vadd.f32 %v1244, %v1343
        %v1360 = vadd.f32 %v1245, %v1344
        %v1361 = vadd.f32 %v1246, %v1345
        %v1362 = vadd.f32 %v1247, %v1346
        %v1363 = vadd.f32 %v1248, %v1347
        %v1364 = vadd.f32 %v1249, %v1348
        %v1365 = vadd.f32 %v1250, %v1349
        %v1366 = vadd.f32 %v1251, %v1350
        %v1367 = vadd.f32 %v1252, %v1351
        %v1368 = vadd.f32 %v1253, %v1352
        %v1369 = vadd.f32 %v1254, %v1353
        %v1370 = vadd.f32 %v1255, %v1354
        %v1371 = vadd.f32 %v1256, %v1355
        %v1372 = vadd.f32 %v1257, %v1356
        %s1373 = scalar_lea.vmem [#allocation2], 8
        %v1374 = vld [vmem:[%s1373] sm:$0xf]
        %v1375 = vld [vmem:[%s1373 + $0x4] sm:$0xf]
        %v1376 = vld [vmem:[%s1373 + $0x8] sm:$0xf]
        %v1377 = vld [vmem:[%s1373 + $0xc] sm:$0xf]
        %v1378 = vld [vmem:[%s1373 + $0x10] sm:$0xf]
        %v1379 = vld [vmem:[%s1373 + $0x14] sm:$0xf]
        %v1380 = vld [vmem:[%s1373 + $0x18] sm:$0xf]
        %v1381 = vld [vmem:[%s1373 + $0x1c] sm:$0xf]
        %v1382 = vld [vmem:[%s1373 + $0x20] sm:$0xf]
        %v1383 = vld [vmem:[%s1373 + $0x24] sm:$0xf]
        %v1384 = vld [vmem:[%s1373 + $0x28] sm:$0xf]
        %v1385 = vld [vmem:[%s1373 + $0x2c] sm:$0xf]
        %v1386 = vld [vmem:[%s1373 + $0x30] sm:$0xf]
        %v1387 = vld [vmem:[%s1373 + $0x34] sm:$0xf]
        %v1388 = vld [vmem:[%s1373 + $0x38] sm:$0xf]
        %v1389 = vld [vmem:[%s1373 + $0x3c] sm:$0xf]
        %s1390 = scalar_lea.vmem %s7, 64
        %v1391 = vld [vmem:[%s1390] sm:$0xf]
        %v1392 = vld [vmem:[%s1390 + $0x4] sm:$0xf]
        %v1393 = vld [vmem:[%s1390 + $0x8] sm:$0xf]
        %v1394 = vld [vmem:[%s1390 + $0xc] sm:$0xf]
        %v1395 = vld [vmem:[%s1390 + $0x10] sm:$0xf]
        %v1396 = vld [vmem:[%s1390 + $0x14] sm:$0xf]
        %v1397 = vld [vmem:[%s1390 + $0x18] sm:$0xf]
        %v1398 = vld [vmem:[%s1390 + $0x1c] sm:$0xf]
        %v1399 = vld [vmem:[%s1390 + $0x20] sm:$0xf]
        %v1400 = vld [vmem:[%s1390 + $0x24] sm:$0xf]
        %v1401 = vld [vmem:[%s1390 + $0x28] sm:$0xf]
        %v1402 = vld [vmem:[%s1390 + $0x2c] sm:$0xf]
        %v1403 = vld [vmem:[%s1390 + $0x30] sm:$0xf]
        %v1404 = vld [vmem:[%s1390 + $0x34] sm:$0xf]
        %v1405 = vld [vmem:[%s1390 + $0x38] sm:$0xf]
        %v1406 = vld [vmem:[%s1390 + $0x3c] sm:$0xf]
        %v1423 = vunpack.c.l.b16 %v1374
        %v1424 = vunpack.c.l.b16 %v1375
        %v1425 = vunpack.c.l.b16 %v1376
        %v1426 = vunpack.c.l.b16 %v1377
        %v1427 = vunpack.c.l.b16 %v1378
        %v1428 = vunpack.c.l.b16 %v1379
        %v1429 = vunpack.c.l.b16 %v1380
        %v1430 = vunpack.c.l.b16 %v1381
        %v1431 = vunpack.c.l.b16 %v1382
        %v1432 = vunpack.c.l.b16 %v1383
        %v1433 = vunpack.c.l.b16 %v1384
        %v1434 = vunpack.c.l.b16 %v1385
        %v1435 = vunpack.c.l.b16 %v1386
        %v1436 = vunpack.c.l.b16 %v1387
        %v1437 = vunpack.c.l.b16 %v1388
        %v1438 = vunpack.c.l.b16 %v1389
        %v1439 = vpack.c.b16 %v1424, %v1423
        %v1440 = vpack.c.b16 %v1426, %v1425
        %v1441 = vpack.c.b16 %v1428, %v1427
        %v1442 = vpack.c.b16 %v1430, %v1429
        %v1443 = vpack.c.b16 %v1432, %v1431
        %v1444 = vpack.c.b16 %v1434, %v1433
        %v1445 = vpack.c.b16 %v1436, %v1435
        %v1446 = vpack.c.b16 %v1438, %v1437
        %v1471 = vunpack.c.l.b16 %v1391
        %v1472 = vunpack.c.l.b16 %v1392
        %v1473 = vunpack.c.l.b16 %v1393
        %v1474 = vunpack.c.l.b16 %v1394
        %v1475 = vunpack.c.l.b16 %v1395
        %v1476 = vunpack.c.l.b16 %v1396
        %v1477 = vunpack.c.l.b16 %v1397
        %v1478 = vunpack.c.l.b16 %v1398
        %v1479 = vunpack.c.l.b16 %v1399
        %v1480 = vunpack.c.l.b16 %v1400
        %v1481 = vunpack.c.l.b16 %v1401
        %v1482 = vunpack.c.l.b16 %v1402
        %v1483 = vunpack.c.l.b16 %v1403
        %v1484 = vunpack.c.l.b16 %v1404
        %v1485 = vunpack.c.l.b16 %v1405
        %v1486 = vunpack.c.l.b16 %v1406
        %v1487 = vpack.c.b16 %v1472, %v1471
        %v1488 = vpack.c.b16 %v1474, %v1473
        %v1489 = vpack.c.b16 %v1476, %v1475
        %v1490 = vpack.c.b16 %v1478, %v1477
        %v1491 = vpack.c.b16 %v1480, %v1479
        %v1492 = vpack.c.b16 %v1482, %v1481
        %v1493 = vpack.c.b16 %v1484, %v1483
        %v1494 = vpack.c.b16 %v1486, %v1485
        %1503 = vmatprep.subr.bf16.mxu0 0
        %1504 = vmatpush1.bf16.msra.mxu0 %v1494
        %1505 = vmatprep.subr.bf16.mxu0 0
        %1506 = vmatpush1.bf16.msra.mxu0 %v1493
        %1507 = vmatprep.subr.bf16.mxu0 0
        %1508 = vmatpush1.bf16.msra.mxu0 %v1492
        %1509 = vmatprep.subr.bf16.mxu0 0
        %1510 = vmatpush1.bf16.msra.mxu0 %v1491
        %1511 = vmatprep.subr.bf16.mxu0 0
        %1512 = vmatpush1.bf16.msra.mxu0 %v1490
        %1513 = vmatprep.subr.bf16.mxu0 0
        %1514 = vmatpush1.bf16.msra.mxu0 %v1489
        %1515 = vmatprep.subr.bf16.mxu0 0
        %1516 = vmatpush1.bf16.msra.mxu0 %v1488
        %1517 = vmatprep.subr.bf16.mxu0 0
        %1518 = vmatpush1.bf16.msra.mxu0 %v1487
        %1519 = vmatprep.subr.bf16.mxu0 0
        %1520 = vmatpush2.bf16.msra.mxu0 0
        %1521 = vmatprep.subr.bf16.mxu0 0
        %1522 = vmatpush2.bf16.msra.mxu0 0
        %1523 = vmatprep.subr.bf16.mxu0 0
        %1524 = vmatpush2.bf16.msra.mxu0 0
        %1525 = vmatprep.subr.bf16.mxu0 0
        %1526 = vmatpush2.bf16.msra.mxu0 0
        %1527 = vmatprep.subr.bf16.mxu0 0
        %1528 = vmatpush2.bf16.msra.mxu0 0
        %1529 = vmatprep.subr.bf16.mxu0 0
        %1530 = vmatpush2.bf16.msra.mxu0 0
        %1531 = vmatprep.subr.bf16.mxu0 0
        %1532 = vmatpush2.bf16.msra.mxu0 0
        %1533 = vmatprep.subr.bf16.mxu0 0
        %1534 = vmatpush2.bf16.msra.mxu0 0
        %1535 = vmatprep.mubr.bf16.mxu0 0
        %1536 = vmatmul.mubr.bf16.gmra.mxu0 %v1439
        %v1537 = vpop.f32.mrf.mxu0
        %v1538 = vadd.f32 0.0, %v1537
        %v1539 = vpop.f32.mrf.mxu0
        %v1540 = vpop.f32.mrf.mxu0
        %v1541 = vadd.f32 0.0, %v1540
        %v1542 = vpop.f32.mrf.mxu0
        %1543 = vmatprep.mubr.bf16.mxu0 0
        %1544 = vmatmul.mubr.bf16.gmra.mxu0 %v1440
        %v1545 = vpop.f32.mrf.mxu0
        %v1546 = vadd.f32 0.0, %v1545
        %v1547 = vpop.f32.mrf.mxu0
        %v1548 = vpop.f32.mrf.mxu0
        %v1549 = vadd.f32 0.0, %v1548
        %v1550 = vpop.f32.mrf.mxu0
        %1551 = vmatprep.mubr.bf16.mxu0 0
        %1552 = vmatmul.mubr.bf16.gmra.mxu0 %v1441
        %v1553 = vpop.f32.mrf.mxu0
        %v1554 = vadd.f32 0.0, %v1553
        %v1555 = vpop.f32.mrf.mxu0
        %v1556 = vpop.f32.mrf.mxu0
        %v1557 = vadd.f32 0.0, %v1556
        %v1558 = vpop.f32.mrf.mxu0
        %1559 = vmatprep.mubr.bf16.mxu0 0
        %1560 = vmatmul.mubr.bf16.gmra.mxu0 %v1442
        %v1561 = vpop.f32.mrf.mxu0
        %v1562 = vadd.f32 0.0, %v1561
        %v1563 = vpop.f32.mrf.mxu0
        %v1564 = vpop.f32.mrf.mxu0
        %v1565 = vadd.f32 0.0, %v1564
        %v1566 = vpop.f32.mrf.mxu0
        %1567 = vmatprep.mubr.bf16.mxu0 0
        %1568 = vmatmul.mubr.bf16.gmra.mxu0 %v1443
        %v1569 = vpop.f32.mrf.mxu0
        %v1570 = vadd.f32 0.0, %v1569
        %v1571 = vpop.f32.mrf.mxu0
        %v1572 = vpop.f32.mrf.mxu0
        %v1573 = vadd.f32 0.0, %v1572
        %v1574 = vpop.f32.mrf.mxu0
        %1575 = vmatprep.mubr.bf16.mxu0 0
        %1576 = vmatmul.mubr.bf16.gmra.mxu0 %v1444
        %v1577 = vpop.f32.mrf.mxu0
        %v1578 = vadd.f32 0.0, %v1577
        %v1579 = vpop.f32.mrf.mxu0
        %v1580 = vpop.f32.mrf.mxu0
        %v1581 = vadd.f32 0.0, %v1580
        %v1582 = vpop.f32.mrf.mxu0
        %1583 = vmatprep.mubr.bf16.mxu0 0
        %1584 = vmatmul.mubr.bf16.gmra.mxu0 %v1445
        %v1585 = vpop.f32.mrf.mxu0
        %v1586 = vadd.f32 0.0, %v1585
        %v1587 = vpop.f32.mrf.mxu0
        %v1588 = vpop.f32.mrf.mxu0
        %v1589 = vadd.f32 0.0, %v1588
        %v1590 = vpop.f32.mrf.mxu0
        %1591 = vmatprep.mubr.bf16.mxu0 0
        %1592 = vmatmul.mubr.bf16.gmra.mxu0 %v1446
        %v1593 = vpop.f32.mrf.mxu0
        %v1594 = vadd.f32 0.0, %v1593
        %v1595 = vpop.f32.mrf.mxu0
        %v1596 = vpop.f32.mrf.mxu0
        %v1597 = vadd.f32 0.0, %v1596
        %v1598 = vpop.f32.mrf.mxu0
        %1599 = vdwg.mxu0
        %v1600 = vrot.slane %v1538, 7
        %v1601 = vrot.slane %v1546, 7
        %v1602 = vrot.slane %v1554, 7
        %v1603 = vrot.slane %v1562, 7
        %v1604 = vrot.slane %v1570, 7
        %v1605 = vrot.slane %v1578, 7
        %v1606 = vrot.slane %v1586, 7
        %v1607 = vrot.slane %v1594, 7
        %v1608 = vrot.slane %v1541, 7
        %v1609 = vrot.slane %v1549, 7
        %v1610 = vrot.slane %v1557, 7
        %v1611 = vrot.slane %v1565, 7
        %v1612 = vrot.slane %v1573, 7
        %v1613 = vrot.slane %v1581, 7
        %v1614 = vrot.slane %v1589, 7
        %v1615 = vrot.slane %v1597, 7
        %v1616 = vsel %vm1127, %v1600, %v1608
        %v1617 = vsel %vm1127, %v1601, %v1609
        %v1618 = vsel %vm1127, %v1602, %v1610
        %v1619 = vsel %vm1127, %v1603, %v1611
        %v1620 = vsel %vm1127, %v1604, %v1612
        %v1621 = vsel %vm1127, %v1605, %v1613
        %v1622 = vsel %vm1127, %v1606, %v1614
        %v1623 = vsel %vm1127, %v1607, %v1615
        %v1624 = vsel %vm1127, %v1608, %v1600
        %v1625 = vsel %vm1127, %v1609, %v1601
        %v1626 = vsel %vm1127, %v1610, %v1602
        %v1627 = vsel %vm1127, %v1611, %v1603
        %v1628 = vsel %vm1127, %v1612, %v1604
        %v1629 = vsel %vm1127, %v1613, %v1605
        %v1630 = vsel %vm1127, %v1614, %v1606
        %v1631 = vsel %vm1127, %v1615, %v1607
        %v1632 = vsel %vm1144, %v1624, 0.0
        %v1633 = vsel %vm1145, %v1616, 0.0
        %v1634 = vsel %vm1144, %v1625, 0.0
        %v1635 = vsel %vm1145, %v1617, 0.0
        %v1636 = vsel %vm1144, %v1626, 0.0
        %v1637 = vsel %vm1145, %v1618, 0.0
        %v1638 = vsel %vm1144, %v1627, 0.0
        %v1639 = vsel %vm1145, %v1619, 0.0
        %v1640 = vsel %vm1144, %v1628, 0.0
        %v1641 = vsel %vm1145, %v1620, 0.0
        %v1642 = vsel %vm1144, %v1629, 0.0
        %v1643 = vsel %vm1145, %v1621, 0.0
        %v1644 = vsel %vm1144, %v1630, 0.0
        %v1645 = vsel %vm1145, %v1622, 0.0
        %v1646 = vsel %vm1144, %v1631, 0.0
        %v1647 = vsel %vm1145, %v1623, 0.0
        %v1648 = vadd.f32 %v1357, %v1632
        %v1649 = vadd.f32 %v1358, %v1633
        %v1650 = vadd.f32 %v1359, %v1634
        %v1651 = vadd.f32 %v1360, %v1635
        %v1652 = vadd.f32 %v1361, %v1636
        %v1653 = vadd.f32 %v1362, %v1637
        %v1654 = vadd.f32 %v1363, %v1638
        %v1655 = vadd.f32 %v1364, %v1639
        %v1656 = vadd.f32 %v1365, %v1640
        %v1657 = vadd.f32 %v1366, %v1641
        %v1658 = vadd.f32 %v1367, %v1642
        %v1659 = vadd.f32 %v1368, %v1643
        %v1660 = vadd.f32 %v1369, %v1644
        %v1661 = vadd.f32 %v1370, %v1645
        %v1662 = vadd.f32 %v1371, %v1646
        %v1663 = vadd.f32 %v1372, %v1647
        %1680 = vrot.lane.b32.xlu0 %v1538, 96
        %v1681 = vpop.permute.xlu0 %1680
        %1682 = vrot.lane.b32.xlu0 %v1541, 96
        %v1683 = vpop.permute.xlu0 %1682
        %1684 = vrot.lane.b32.xlu0 %v1546, 96
        %v1685 = vpop.permute.xlu0 %1684
        %1686 = vrot.lane.b32.xlu0 %v1549, 96
        %v1687 = vpop.permute.xlu0 %1686
        %1688 = vrot.lane.b32.xlu0 %v1554, 96
        %v1689 = vpop.permute.xlu0 %1688
        %1690 = vrot.lane.b32.xlu0 %v1557, 96
        %v1691 = vpop.permute.xlu0 %1690
        %1692 = vrot.lane.b32.xlu0 %v1562, 96
        %v1693 = vpop.permute.xlu0 %1692
        %1694 = vrot.lane.b32.xlu0 %v1565, 96
        %v1695 = vpop.permute.xlu0 %1694
        %1696 = vrot.lane.b32.xlu0 %v1570, 96
        %v1697 = vpop.permute.xlu0 %1696
        %1698 = vrot.lane.b32.xlu0 %v1573, 96
        %v1699 = vpop.permute.xlu0 %1698
        %1700 = vrot.lane.b32.xlu0 %v1578, 96
        %v1701 = vpop.permute.xlu0 %1700
        %1702 = vrot.lane.b32.xlu0 %v1581, 96
        %v1703 = vpop.permute.xlu0 %1702
        %1704 = vrot.lane.b32.xlu0 %v1586, 96
        %v1705 = vpop.permute.xlu0 %1704
        %1706 = vrot.lane.b32.xlu0 %v1589, 96
        %v1707 = vpop.permute.xlu0 %1706
        %1708 = vrot.lane.b32.xlu0 %v1594, 96
        %v1709 = vpop.permute.xlu0 %1708
        %1710 = vrot.lane.b32.xlu0 %v1597, 96
        %v1711 = vpop.permute.xlu0 %1710
        %v1728 = vadd.f32 %v1648, %v1681
        %v1729 = vadd.f32 %v1649, %v1683
        %v1730 = vadd.f32 %v1650, %v1685
        %v1731 = vadd.f32 %v1651, %v1687
        %v1732 = vadd.f32 %v1652, %v1689
        %v1733 = vadd.f32 %v1653, %v1691
        %v1734 = vadd.f32 %v1654, %v1693
        %v1735 = vadd.f32 %v1655, %v1695
        %v1736 = vadd.f32 %v1656, %v1697
        %v1737 = vadd.f32 %v1657, %v1699
        %v1738 = vadd.f32 %v1658, %v1701
        %v1739 = vadd.f32 %v1659, %v1703
        %v1740 = vadd.f32 %v1660, %v1705
        %v1741 = vadd.f32 %v1661, %v1707
        %v1742 = vadd.f32 %v1662, %v1709
        %v1743 = vadd.f32 %v1663, %v1711
        %1744 = vrot.lane.b32.xlu0 %v1538, 64
        %v1745 = vpop.permute.xlu0 %1744
        %1746 = vrot.lane.b32.xlu0 %v1541, 64
        %v1747 = vpop.permute.xlu0 %1746
        %1748 = vrot.lane.b32.xlu0 %v1546, 64
        %v1749 = vpop.permute.xlu0 %1748
        %1750 = vrot.lane.b32.xlu0 %v1549, 64
        %v1751 = vpop.permute.xlu0 %1750
        %1752 = vrot.lane.b32.xlu0 %v1554, 64
        %v1753 = vpop.permute.xlu0 %1752
        %1754 = vrot.lane.b32.xlu0 %v1557, 64
        %v1755 = vpop.permute.xlu0 %1754
        %1756 = vrot.lane.b32.xlu0 %v1562, 64
        %v1757 = vpop.permute.xlu0 %1756
        %1758 = vrot.lane.b32.xlu0 %v1565, 64
        %v1759 = vpop.permute.xlu0 %1758
        %1760 = vrot.lane.b32.xlu0 %v1570, 64
        %v1761 = vpop.permute.xlu0 %1760
        %1762 = vrot.lane.b32.xlu0 %v1573, 64
        %v1763 = vpop.permute.xlu0 %1762
        %1764 = vrot.lane.b32.xlu0 %v1578, 64
        %v1765 = vpop.permute.xlu0 %1764
        %1766 = vrot.lane.b32.xlu0 %v1581, 64
        %v1767 = vpop.permute.xlu0 %1766
        %1768 = vrot.lane.b32.xlu0 %v1586, 64
        %v1769 = vpop.permute.xlu0 %1768
        %1770 = vrot.lane.b32.xlu0 %v1589, 64
        %v1771 = vpop.permute.xlu0 %1770
        %1772 = vrot.lane.b32.xlu0 %v1594, 64
        %v1773 = vpop.permute.xlu0 %1772
        %1774 = vrot.lane.b32.xlu0 %v1597, 64
        %v1775 = vpop.permute.xlu0 %1774
        %v1792 = vrot.slane %v1745, 1
        %v1793 = vrot.slane %v1749, 1
        %v1794 = vrot.slane %v1753, 1
        %v1795 = vrot.slane %v1757, 1
        %v1796 = vrot.slane %v1761, 1
        %v1797 = vrot.slane %v1765, 1
        %v1798 = vrot.slane %v1769, 1
        %v1799 = vrot.slane %v1773, 1
        %v1800 = vrot.slane %v1747, 1
        %v1801 = vrot.slane %v1751, 1
        %v1802 = vrot.slane %v1755, 1
        %v1803 = vrot.slane %v1759, 1
        %v1804 = vrot.slane %v1763, 1
        %v1805 = vrot.slane %v1767, 1
        %v1806 = vrot.slane %v1771, 1
        %v1807 = vrot.slane %v1775, 1
        %v1808 = vsel %vm1322, %v1792, %v1800
        %v1809 = vsel %vm1322, %v1793, %v1801
        %v1810 = vsel %vm1322, %v1794, %v1802
        %v1811 = vsel %vm1322, %v1795, %v1803
        %v1812 = vsel %vm1322, %v1796, %v1804
        %v1813 = vsel %vm1322, %v1797, %v1805
        %v1814 = vsel %vm1322, %v1798, %v1806
        %v1815 = vsel %vm1322, %v1799, %v1807
        %v1816 = vsel %vm1322, %v1800, %v1792
        %v1817 = vsel %vm1322, %v1801, %v1793
        %v1818 = vsel %vm1322, %v1802, %v1794
        %v1819 = vsel %vm1322, %v1803, %v1795
        %v1820 = vsel %vm1322, %v1804, %v1796
        %v1821 = vsel %vm1322, %v1805, %v1797
        %v1822 = vsel %vm1322, %v1806, %v1798
        %v1823 = vsel %vm1322, %v1807, %v1799
        %v1824 = vsel %vm1339, %v1808, 0.0
        %v1825 = vsel %vm1340, %v1816, 0.0
        %v1826 = vsel %vm1339, %v1809, 0.0
        %v1827 = vsel %vm1340, %v1817, 0.0
        %v1828 = vsel %vm1339, %v1810, 0.0
        %v1829 = vsel %vm1340, %v1818, 0.0
        %v1830 = vsel %vm1339, %v1811, 0.0
        %v1831 = vsel %vm1340, %v1819, 0.0
        %v1832 = vsel %vm1339, %v1812, 0.0
        %v1833 = vsel %vm1340, %v1820, 0.0
        %v1834 = vsel %vm1339, %v1813, 0.0
        %v1835 = vsel %vm1340, %v1821, 0.0
        %v1836 = vsel %vm1339, %v1814, 0.0
        %v1837 = vsel %vm1340, %v1822, 0.0
        %v1838 = vsel %vm1339, %v1815, 0.0
        %v1839 = vsel %vm1340, %v1823, 0.0
        %v1840 = vadd.f32 %v1728, %v1824
        %v1841 = vadd.f32 %v1729, %v1825
        %v1842 = vadd.f32 %v1730, %v1826
        %v1843 = vadd.f32 %v1731, %v1827
        %v1844 = vadd.f32 %v1732, %v1828
        %v1845 = vadd.f32 %v1733, %v1829
        %v1846 = vadd.f32 %v1734, %v1830
        %v1847 = vadd.f32 %v1735, %v1831
        %v1848 = vadd.f32 %v1736, %v1832
        %v1849 = vadd.f32 %v1737, %v1833
        %v1850 = vadd.f32 %v1738, %v1834
        %v1851 = vadd.f32 %v1739, %v1835
        %v1852 = vadd.f32 %v1740, %v1836
        %v1853 = vadd.f32 %v1741, %v1837
        %v1854 = vadd.f32 %v1742, %v1838
        %v1855 = vadd.f32 %v1743, %v1839
        %s1856 = scalar_lea.vmem [#allocation2], 16
        %v1857 = vld [vmem:[%s1856] sm:$0xf]
        %v1858 = vld [vmem:[%s1856 + $0x4] sm:$0xf]
        %v1859 = vld [vmem:[%s1856 + $0x8] sm:$0xf]
        %v1860 = vld [vmem:[%s1856 + $0xc] sm:$0xf]
        %v1861 = vld [vmem:[%s1856 + $0x10] sm:$0xf]
        %v1862 = vld [vmem:[%s1856 + $0x14] sm:$0xf]
        %v1863 = vld [vmem:[%s1856 + $0x18] sm:$0xf]
        %v1864 = vld [vmem:[%s1856 + $0x1c] sm:$0xf]
        %v1865 = vld [vmem:[%s1856 + $0x20] sm:$0xf]
        %v1866 = vld [vmem:[%s1856 + $0x24] sm:$0xf]
        %v1867 = vld [vmem:[%s1856 + $0x28] sm:$0xf]
        %v1868 = vld [vmem:[%s1856 + $0x2c] sm:$0xf]
        %v1869 = vld [vmem:[%s1856 + $0x30] sm:$0xf]
        %v1870 = vld [vmem:[%s1856 + $0x34] sm:$0xf]
        %v1871 = vld [vmem:[%s1856 + $0x38] sm:$0xf]
        %v1872 = vld [vmem:[%s1856 + $0x3c] sm:$0xf]
        %s1873 = scalar_lea.vmem %s7, 128
        %v1874 = vld [vmem:[%s1873] sm:$0xf]
        %v1875 = vld [vmem:[%s1873 + $0x4] sm:$0xf]
        %v1876 = vld [vmem:[%s1873 + $0x8] sm:$0xf]
        %v1877 = vld [vmem:[%s1873 + $0xc] sm:$0xf]
        %v1878 = vld [vmem:[%s1873 + $0x10] sm:$0xf]
        %v1879 = vld [vmem:[%s1873 + $0x14] sm:$0xf]
        %v1880 = vld [vmem:[%s1873 + $0x18] sm:$0xf]
        %v1881 = vld [vmem:[%s1873 + $0x1c] sm:$0xf]
        %v1882 = vld [vmem:[%s1873 + $0x20] sm:$0xf]
        %v1883 = vld [vmem:[%s1873 + $0x24] sm:$0xf]
        %v1884 = vld [vmem:[%s1873 + $0x28] sm:$0xf]
        %v1885 = vld [vmem:[%s1873 + $0x2c] sm:$0xf]
        %v1886 = vld [vmem:[%s1873 + $0x30] sm:$0xf]
        %v1887 = vld [vmem:[%s1873 + $0x34] sm:$0xf]
        %v1888 = vld [vmem:[%s1873 + $0x38] sm:$0xf]
        %v1889 = vld [vmem:[%s1873 + $0x3c] sm:$0xf]
        %v1906 = vunpack.c.l.b16 %v1857
        %v1907 = vunpack.c.l.b16 %v1858
        %v1908 = vunpack.c.l.b16 %v1859
        %v1909 = vunpack.c.l.b16 %v1860
        %v1910 = vunpack.c.l.b16 %v1861
        %v1911 = vunpack.c.l.b16 %v1862
        %v1912 = vunpack.c.l.b16 %v1863
        %v1913 = vunpack.c.l.b16 %v1864
        %v1914 = vunpack.c.l.b16 %v1865
        %v1915 = vunpack.c.l.b16 %v1866
        %v1916 = vunpack.c.l.b16 %v1867
        %v1917 = vunpack.c.l.b16 %v1868
        %v1918 = vunpack.c.l.b16 %v1869
        %v1919 = vunpack.c.l.b16 %v1870
        %v1920 = vunpack.c.l.b16 %v1871
        %v1921 = vunpack.c.l.b16 %v1872
        %v1922 = vpack.c.b16 %v1907, %v1906
        %v1923 = vpack.c.b16 %v1909, %v1908
        %v1924 = vpack.c.b16 %v1911, %v1910
        %v1925 = vpack.c.b16 %v1913, %v1912
        %v1926 = vpack.c.b16 %v1915, %v1914
        %v1927 = vpack.c.b16 %v1917, %v1916
        %v1928 = vpack.c.b16 %v1919, %v1918
        %v1929 = vpack.c.b16 %v1921, %v1920
        %v1954 = vunpack.c.l.b16 %v1874
        %v1955 = vunpack.c.l.b16 %v1875
        %v1956 = vunpack.c.l.b16 %v1876
        %v1957 = vunpack.c.l.b16 %v1877
        %v1958 = vunpack.c.l.b16 %v1878
        %v1959 = vunpack.c.l.b16 %v1879
        %v1960 = vunpack.c.l.b16 %v1880
        %v1961 = vunpack.c.l.b16 %v1881
        %v1962 = vunpack.c.l.b16 %v1882
        %v1963 = vunpack.c.l.b16 %v1883
        %v1964 = vunpack.c.l.b16 %v1884
        %v1965 = vunpack.c.l.b16 %v1885
        %v1966 = vunpack.c.l.b16 %v1886
        %v1967 = vunpack.c.l.b16 %v1887
        %v1968 = vunpack.c.l.b16 %v1888
        %v1969 = vunpack.c.l.b16 %v1889
        %v1970 = vpack.c.b16 %v1955, %v1954
        %v1971 = vpack.c.b16 %v1957, %v1956
        %v1972 = vpack.c.b16 %v1959, %v1958
        %v1973 = vpack.c.b16 %v1961, %v1960
        %v1974 = vpack.c.b16 %v1963, %v1962
        %v1975 = vpack.c.b16 %v1965, %v1964
        %v1976 = vpack.c.b16 %v1967, %v1966
        %v1977 = vpack.c.b16 %v1969, %v1968
        %1986 = vmatprep.subr.bf16.mxu0 0
        %1987 = vmatpush1.bf16.msra.mxu0 %v1977
        %1988 = vmatprep.subr.bf16.mxu0 0
        %1989 = vmatpush1.bf16.msra.mxu0 %v1976
        %1990 = vmatprep.subr.bf16.mxu0 0
        %1991 = vmatpush1.bf16.msra.mxu0 %v1975
        %1992 = vmatprep.subr.bf16.mxu0 0
        %1993 = vmatpush1.bf16.msra.mxu0 %v1974
        %1994 = vmatprep.subr.bf16.mxu0 0
        %1995 = vmatpush1.bf16.msra.mxu0 %v1973
        %1996 = vmatprep.subr.bf16.mxu0 0
        %1997 = vmatpush1.bf16.msra.mxu0 %v1972
        %1998 = vmatprep.subr.bf16.mxu0 0
        %1999 = vmatpush1.bf16.msra.mxu0 %v1971
        %2000 = vmatprep.subr.bf16.mxu0 0
        %2001 = vmatpush1.bf16.msra.mxu0 %v1970
        %2002 = vmatprep.subr.bf16.mxu0 0
        %2003 = vmatpush2.bf16.msra.mxu0 0
        %2004 = vmatprep.subr.bf16.mxu0 0
        %2005 = vmatpush2.bf16.msra.mxu0 0
        %2006 = vmatprep.subr.bf16.mxu0 0
        %2007 = vmatpush2.bf16.msra.mxu0 0
        %2008 = vmatprep.subr.bf16.mxu0 0
        %2009 = vmatpush2.bf16.msra.mxu0 0
        %2010 = vmatprep.subr.bf16.mxu0 0
        %2011 = vmatpush2.bf16.msra.mxu0 0
        %2012 = vmatprep.subr.bf16.mxu0 0
        %2013 = vmatpush2.bf16.msra.mxu0 0
        %2014 = vmatprep.subr.bf16.mxu0 0
        %2015 = vmatpush2.bf16.msra.mxu0 0
        %2016 = vmatprep.subr.bf16.mxu0 0
        %2017 = vmatpush2.bf16.msra.mxu0 0
        %2018 = vmatprep.mubr.bf16.mxu0 0
        %2019 = vmatmul.mubr.bf16.gmra.mxu0 %v1922
        %v2020 = vpop.f32.mrf.mxu0
        %v2021 = vadd.f32 0.0, %v2020
        %v2022 = vpop.f32.mrf.mxu0
        %v2023 = vpop.f32.mrf.mxu0
        %v2024 = vadd.f32 0.0, %v2023
        %v2025 = vpop.f32.mrf.mxu0
        %2026 = vmatprep.mubr.bf16.mxu0 0
        %2027 = vmatmul.mubr.bf16.gmra.mxu0 %v1923
        %v2028 = vpop.f32.mrf.mxu0
        %v2029 = vadd.f32 0.0, %v2028
        %v2030 = vpop.f32.mrf.mxu0
        %v2031 = vpop.f32.mrf.mxu0
        %v2032 = vadd.f32 0.0, %v2031
        %v2033 = vpop.f32.mrf.mxu0
        %2034 = vmatprep.mubr.bf16.mxu0 0
        %2035 = vmatmul.mubr.bf16.gmra.mxu0 %v1924
        %v2036 = vpop.f32.mrf.mxu0
        %v2037 = vadd.f32 0.0, %v2036
        %v2038 = vpop.f32.mrf.mxu0
        %v2039 = vpop.f32.mrf.mxu0
        %v2040 = vadd.f32 0.0, %v2039
        %v2041 = vpop.f32.mrf.mxu0
        %2042 = vmatprep.mubr.bf16.mxu0 0
        %2043 = vmatmul.mubr.bf16.gmra.mxu0 %v1925
        %v2044 = vpop.f32.mrf.mxu0
        %v2045 = vadd.f32 0.0, %v2044
        %v2046 = vpop.f32.mrf.mxu0
        %v2047 = vpop.f32.mrf.mxu0
        %v2048 = vadd.f32 0.0, %v2047
        %v2049 = vpop.f32.mrf.mxu0
        %2050 = vmatprep.mubr.bf16.mxu0 0
        %2051 = vmatmul.mubr.bf16.gmra.mxu0 %v1926
        %v2052 = vpop.f32.mrf.mxu0
        %v2053 = vadd.f32 0.0, %v2052
        %v2054 = vpop.f32.mrf.mxu0
        %v2055 = vpop.f32.mrf.mxu0
        %v2056 = vadd.f32 0.0, %v2055
        %v2057 = vpop.f32.mrf.mxu0
        %2058 = vmatprep.mubr.bf16.mxu0 0
        %2059 = vmatmul.mubr.bf16.gmra.mxu0 %v1927
        %v2060 = vpop.f32.mrf.mxu0
        %v2061 = vadd.f32 0.0, %v2060
        %v2062 = vpop.f32.mrf.mxu0
        %v2063 = vpop.f32.mrf.mxu0
        %v2064 = vadd.f32 0.0, %v2063
        %v2065 = vpop.f32.mrf.mxu0
        %2066 = vmatprep.mubr.bf16.mxu0 0
        %2067 = vmatmul.mubr.bf16.gmra.mxu0 %v1928
        %v2068 = vpop.f32.mrf.mxu0
        %v2069 = vadd.f32 0.0, %v2068
        %v2070 = vpop.f32.mrf.mxu0
        %v2071 = vpop.f32.mrf.mxu0
        %v2072 = vadd.f32 0.0, %v2071
        %v2073 = vpop.f32.mrf.mxu0
        %2074 = vmatprep.mubr.bf16.mxu0 0
        %2075 = vmatmul.mubr.bf16.gmra.mxu0 %v1929
        %v2076 = vpop.f32.mrf.mxu0
        %v2077 = vadd.f32 0.0, %v2076
        %v2078 = vpop.f32.mrf.mxu0
        %v2079 = vpop.f32.mrf.mxu0
        %v2080 = vadd.f32 0.0, %v2079
        %v2081 = vpop.f32.mrf.mxu0
        %2082 = vdwg.mxu0
        %v2083 = vrot.slane %v2021, 7
        %v2084 = vrot.slane %v2029, 7
        %v2085 = vrot.slane %v2037, 7
        %v2086 = vrot.slane %v2045, 7
        %v2087 = vrot.slane %v2053, 7
        %v2088 = vrot.slane %v2061, 7
        %v2089 = vrot.slane %v2069, 7
        %v2090 = vrot.slane %v2077, 7
        %v2091 = vrot.slane %v2024, 7
        %v2092 = vrot.slane %v2032, 7
        %v2093 = vrot.slane %v2040, 7
        %v2094 = vrot.slane %v2048, 7
        %v2095 = vrot.slane %v2056, 7
        %v2096 = vrot.slane %v2064, 7
        %v2097 = vrot.slane %v2072, 7
        %v2098 = vrot.slane %v2080, 7
        %v2099 = vsel %vm1127, %v2083, %v2091
        %v2100 = vsel %vm1127, %v2084, %v2092
        %v2101 = vsel %vm1127, %v2085, %v2093
        %v2102 = vsel %vm1127, %v2086, %v2094
        %v2103 = vsel %vm1127, %v2087, %v2095
        %v2104 = vsel %vm1127, %v2088, %v2096
        %v2105 = vsel %vm1127, %v2089, %v2097
        %v2106 = vsel %vm1127, %v2090, %v2098
        %v2107 = vsel %vm1127, %v2091, %v2083
        %v2108 = vsel %vm1127, %v2092, %v2084
        %v2109 = vsel %vm1127, %v2093, %v2085
        %v2110 = vsel %vm1127, %v2094, %v2086
        %v2111 = vsel %vm1127, %v2095, %v2087
        %v2112 = vsel %vm1127, %v2096, %v2088
        %v2113 = vsel %vm1127, %v2097, %v2089
        %v2114 = vsel %vm1127, %v2098, %v2090
        %v2115 = vsel %vm1144, %v2107, 0.0
        %v2116 = vsel %vm1145, %v2099, 0.0
        %v2117 = vsel %vm1144, %v2108, 0.0
        %v2118 = vsel %vm1145, %v2100, 0.0
        %v2119 = vsel %vm1144, %v2109, 0.0
        %v2120 = vsel %vm1145, %v2101, 0.0
        %v2121 = vsel %vm1144, %v2110, 0.0
        %v2122 = vsel %vm1145, %v2102, 0.0
        %v2123 = vsel %vm1144, %v2111, 0.0
        %v2124 = vsel %vm1145, %v2103, 0.0
        %v2125 = vsel %vm1144, %v2112, 0.0
        %v2126 = vsel %vm1145, %v2104, 0.0
        %v2127 = vsel %vm1144, %v2113, 0.0
        %v2128 = vsel %vm1145, %v2105, 0.0
        %v2129 = vsel %vm1144, %v2114, 0.0
        %v2130 = vsel %vm1145, %v2106, 0.0
        %v2131 = vadd.f32 %v1840, %v2115
        %v2132 = vadd.f32 %v1841, %v2116
        %v2133 = vadd.f32 %v1842, %v2117
        %v2134 = vadd.f32 %v1843, %v2118
        %v2135 = vadd.f32 %v1844, %v2119
        %v2136 = vadd.f32 %v1845, %v2120
        %v2137 = vadd.f32 %v1846, %v2121
        %v2138 = vadd.f32 %v1847, %v2122
        %v2139 = vadd.f32 %v1848, %v2123
        %v2140 = vadd.f32 %v1849, %v2124
        %v2141 = vadd.f32 %v1850, %v2125
        %v2142 = vadd.f32 %v1851, %v2126
        %v2143 = vadd.f32 %v1852, %v2127
        %v2144 = vadd.f32 %v1853, %v2128
        %v2145 = vadd.f32 %v1854, %v2129
        %v2146 = vadd.f32 %v1855, %v2130
        %2163 = vrot.lane.b32.xlu0 %v2021, 96
        %v2164 = vpop.permute.xlu0 %2163
        %2165 = vrot.lane.b32.xlu0 %v2024, 96
        %v2166 = vpop.permute.xlu0 %2165
        %2167 = vrot.lane.b32.xlu0 %v2029, 96
        %v2168 = vpop.permute.xlu0 %2167
        %2169 = vrot.lane.b32.xlu0 %v2032, 96
        %v2170 = vpop.permute.xlu0 %2169
        %2171 = vrot.lane.b32.xlu0 %v2037, 96
        %v2172 = vpop.permute.xlu0 %2171
        %2173 = vrot.lane.b32.xlu0 %v2040, 96
        %v2174 = vpop.permute.xlu0 %2173
        %2175 = vrot.lane.b32.xlu0 %v2045, 96
        %v2176 = vpop.permute.xlu0 %2175
        %2177 = vrot.lane.b32.xlu0 %v2048, 96
        %v2178 = vpop.permute.xlu0 %2177
        %2179 = vrot.lane.b32.xlu0 %v2053, 96
        %v2180 = vpop.permute.xlu0 %2179
        %2181 = vrot.lane.b32.xlu0 %v2056, 96
        %v2182 = vpop.permute.xlu0 %2181
        %2183 = vrot.lane.b32.xlu0 %v2061, 96
        %v2184 = vpop.permute.xlu0 %2183
        %2185 = vrot.lane.b32.xlu0 %v2064, 96
        %v2186 = vpop.permute.xlu0 %2185
        %2187 = vrot.lane.b32.xlu0 %v2069, 96
        %v2188 = vpop.permute.xlu0 %2187
        %2189 = vrot.lane.b32.xlu0 %v2072, 96
        %v2190 = vpop.permute.xlu0 %2189
        %2191 = vrot.lane.b32.xlu0 %v2077, 96
        %v2192 = vpop.permute.xlu0 %2191
        %2193 = vrot.lane.b32.xlu0 %v2080, 96
        %v2194 = vpop.permute.xlu0 %2193
        %v2211 = vadd.f32 %v2131, %v2164
        %v2212 = vadd.f32 %v2132, %v2166
        %v2213 = vadd.f32 %v2133, %v2168
        %v2214 = vadd.f32 %v2134, %v2170
        %v2215 = vadd.f32 %v2135, %v2172
        %v2216 = vadd.f32 %v2136, %v2174
        %v2217 = vadd.f32 %v2137, %v2176
        %v2218 = vadd.f32 %v2138, %v2178
        %v2219 = vadd.f32 %v2139, %v2180
        %v2220 = vadd.f32 %v2140, %v2182
        %v2221 = vadd.f32 %v2141, %v2184
        %v2222 = vadd.f32 %v2142, %v2186
        %v2223 = vadd.f32 %v2143, %v2188
        %v2224 = vadd.f32 %v2144, %v2190
        %v2225 = vadd.f32 %v2145, %v2192
        %v2226 = vadd.f32 %v2146, %v2194
        %2227 = vrot.lane.b32.xlu0 %v2021, 64
        %v2228 = vpop.permute.xlu0 %2227
        %2229 = vrot.lane.b32.xlu0 %v2024, 64
        %v2230 = vpop.permute.xlu0 %2229
        %2231 = vrot.lane.b32.xlu0 %v2029, 64
        %v2232 = vpop.permute.xlu0 %2231
        %2233 = vrot.lane.b32.xlu0 %v2032, 64
        %v2234 = vpop.permute.xlu0 %2233
        %2235 = vrot.lane.b32.xlu0 %v2037, 64
        %v2236 = vpop.permute.xlu0 %2235
        %2237 = vrot.lane.b32.xlu0 %v2040, 64
        %v2238 = vpop.permute.xlu0 %2237
        %2239 = vrot.lane.b32.xlu0 %v2045, 64
        %v2240 = vpop.permute.xlu0 %2239
        %2241 = vrot.lane.b32.xlu0 %v2048, 64
        %v2242 = vpop.permute.xlu0 %2241
        %2243 = vrot.lane.b32.xlu0 %v2053, 64
        %v2244 = vpop.permute.xlu0 %2243
        %2245 = vrot.lane.b32.xlu0 %v2056, 64
        %v2246 = vpop.permute.xlu0 %2245
        %2247 = vrot.lane.b32.xlu0 %v2061, 64
        %v2248 = vpop.permute.xlu0 %2247
        %2249 = vrot.lane.b32.xlu0 %v2064, 64
        %v2250 = vpop.permute.xlu0 %2249
        %2251 = vrot.lane.b32.xlu0 %v2069, 64
        %v2252 = vpop.permute.xlu0 %2251
        %2253 = vrot.lane.b32.xlu0 %v2072, 64
        %v2254 = vpop.permute.xlu0 %2253
        %2255 = vrot.lane.b32.xlu0 %v2077, 64
        %v2256 = vpop.permute.xlu0 %2255
        %2257 = vrot.lane.b32.xlu0 %v2080, 64
        %v2258 = vpop.permute.xlu0 %2257
        %v2275 = vrot.slane %v2228, 1
        %v2276 = vrot.slane %v2232, 1
        %v2277 = vrot.slane %v2236, 1
        %v2278 = vrot.slane %v2240, 1
        %v2279 = vrot.slane %v2244, 1
        %v2280 = vrot.slane %v2248, 1
        %v2281 = vrot.slane %v2252, 1
        %v2282 = vrot.slane %v2256, 1
        %v2283 = vrot.slane %v2230, 1
        %v2284 = vrot.slane %v2234, 1
        %v2285 = vrot.slane %v2238, 1
        %v2286 = vrot.slane %v2242, 1
        %v2287 = vrot.slane %v2246, 1
        %v2288 = vrot.slane %v2250, 1
        %v2289 = vrot.slane %v2254, 1
        %v2290 = vrot.slane %v2258, 1
        %v2291 = vsel %vm1322, %v2275, %v2283
        %v2292 = vsel %vm1322, %v2276, %v2284
        %v2293 = vsel %vm1322, %v2277, %v2285
        %v2294 = vsel %vm1322, %v2278, %v2286
        %v2295 = vsel %vm1322, %v2279, %v2287
        %v2296 = vsel %vm1322, %v2280, %v2288
        %v2297 = vsel %vm1322, %v2281, %v2289
        %v2298 = vsel %vm1322, %v2282, %v2290
        %v2299 = vsel %vm1322, %v2283, %v2275
        %v2300 = vsel %vm1322, %v2284, %v2276
        %v2301 = vsel %vm1322, %v2285, %v2277
        %v2302 = vsel %vm1322, %v2286, %v2278
        %v2303 = vsel %vm1322, %v2287, %v2279
        %v2304 = vsel %vm1322, %v2288, %v2280
        %v2305 = vsel %vm1322, %v2289, %v2281
        %v2306 = vsel %vm1322, %v2290, %v2282
        %v2307 = vsel %vm1339, %v2291, 0.0
        %v2308 = vsel %vm1340, %v2299, 0.0
        %v2309 = vsel %vm1339, %v2292, 0.0
        %v2310 = vsel %vm1340, %v2300, 0.0
        %v2311 = vsel %vm1339, %v2293, 0.0
        %v2312 = vsel %vm1340, %v2301, 0.0
        %v2313 = vsel %vm1339, %v2294, 0.0
        %v2314 = vsel %vm1340, %v2302, 0.0
        %v2315 = vsel %vm1339, %v2295, 0.0
        %v2316 = vsel %vm1340, %v2303, 0.0
        %v2317 = vsel %vm1339, %v2296, 0.0
        %v2318 = vsel %vm1340, %v2304, 0.0
        %v2319 = vsel %vm1339, %v2297, 0.0
        %v2320 = vsel %vm1340, %v2305, 0.0
        %v2321 = vsel %vm1339, %v2298, 0.0
        %v2322 = vsel %vm1340, %v2306, 0.0
        %v2323 = vadd.f32 %v2211, %v2307
        %v2324 = vadd.f32 %v2212, %v2308
        %v2325 = vadd.f32 %v2213, %v2309
        %v2326 = vadd.f32 %v2214, %v2310
        %v2327 = vadd.f32 %v2215, %v2311
        %v2328 = vadd.f32 %v2216, %v2312
        %v2329 = vadd.f32 %v2217, %v2313
        %v2330 = vadd.f32 %v2218, %v2314
        %v2331 = vadd.f32 %v2219, %v2315
        %v2332 = vadd.f32 %v2220, %v2316
        %v2333 = vadd.f32 %v2221, %v2317
        %v2334 = vadd.f32 %v2222, %v2318
        %v2335 = vadd.f32 %v2223, %v2319
        %v2336 = vadd.f32 %v2224, %v2320
        %v2337 = vadd.f32 %v2225, %v2321
        %v2338 = vadd.f32 %v2226, %v2322
        %vm2339 = vcmask 261120
        %2340 = vst.msk [vmem:[%s451] sm:$0xff] %vm2339, %v2323
        %2341 = vst.msk [vmem:[%s451 + $0x8] sm:$0xff] %vm2339, %v2324
        %2342 = vst.msk [vmem:[%s451 + $0x10] sm:$0xff] %vm2339, %v2325
        %2343 = vst.msk [vmem:[%s451 + $0x18] sm:$0xff] %vm2339, %v2326
        %2344 = vst.msk [vmem:[%s451 + $0x20] sm:$0xff] %vm2339, %v2327
        %2345 = vst.msk [vmem:[%s451 + $0x28] sm:$0xff] %vm2339, %v2328
        %2346 = vst.msk [vmem:[%s451 + $0x30] sm:$0xff] %vm2339, %v2329
        %2347 = vst.msk [vmem:[%s451 + $0x38] sm:$0xff] %vm2339, %v2330
        %2348 = vst.msk [vmem:[%s451 + $0x40] sm:$0xff] %vm2339, %v2331
        %2349 = vst.msk [vmem:[%s451 + $0x48] sm:$0xff] %vm2339, %v2332
        %2350 = vst.msk [vmem:[%s451 + $0x50] sm:$0xff] %vm2339, %v2333
        %2351 = vst.msk [vmem:[%s451 + $0x58] sm:$0xff] %vm2339, %v2334
        %2352 = vst.msk [vmem:[%s451 + $0x60] sm:$0xff] %vm2339, %v2335
        %2353 = vst.msk [vmem:[%s451 + $0x68] sm:$0xff] %vm2339, %v2336
        %2354 = vst.msk [vmem:[%s451 + $0x70] sm:$0xff] %vm2339, %v2337
        %2355 = vst.msk [vmem:[%s451 + $0x78] sm:$0xff] %vm2339, %v2338
        %s2356 = sand.u32 %s255, 1
        %s2357 = scalar_lea.sflag [#allocation5], %s2356
        %s2358 = sand.u32 %s255, 1
        %s2359 = smul.addr %s2358, 128
        %s2360 = scalar_lea.vmem [#allocation9], %s2359
        // Predicated region
        $region73: #{tpu_custom_call.1} parent=51 // pred_check
          %p2361 = pneg %p265
        $region74: #{tpu_custom_call.1} parent=51 // pred_check_branch
          %2363 = sbr.rel (%p2361) target = $region76
        $region75: #{tpu_custom_call.1} parent=51 // pred_region
          %s2364 = smul.u32 8, %s33
          %s2366 = ssub.s32 2048, 2048
          %2367 = vsyncadd %s2357, %s2366
          %s2368 = smul.addr %s2364, 2
          %s2369 = smul.addr %s32, 32
          %s2370 = sadd.s32 %s2368, %s2369
          %s2371 = smul.addr %s2370, 128
          %s2372 = scalar_lea.hbm %s8, %s2371
          %s2373 = sshll.u32 %s2360, 4
          %s2374 = int_to_ptr.vmem [resolvable:$true] %s2373
          %2379 = dma.vmem_to_hbm [thread:$0]  %s2374, 2048, %s2372, %s2357, 128, 128, 8
        $region76: #{tpu_custom_call.1} parent=51 // pred_fallthru
          _
      $region52: #{tpu_custom_call.1} parent=5 // pred_fallthru
        _
      %p2380 = scmp.le.s32.totalorder 2, %s23
      // Predicated region
      $region77: #{tpu_custom_call.1} parent=5 // pred_check
        %p2381 = pneg %p2380
      $region78: #{tpu_custom_call.1} parent=5 // pred_check_branch
        %2383 = sbr.rel (%p2381) target = $region80
      $region79: #{tpu_custom_call.1} parent=5 // pred_region
        %s2384 = ssub.s32 %s23, 2
        // Predicated region
        $region81: #{tpu_custom_call.1} parent=79 // pred_check
          %p2385 = pneg %p271
        $region82: #{tpu_custom_call.1} parent=79 // pred_check_branch
          %2387 = sbr.rel (%p2385) target = $region84
        $region83: #{tpu_custom_call.1} parent=79 // pred_region
          %s2388 = sand.u32 %s256, 1
          %s2389 = scalar_lea.sflag [#allocation5], %s2388
          %s2390 = sand.u32 %s256, 1
          %s2391 = smul.addr %s2390, 128
          %s2392 = scalar_lea.vmem [#allocation9], %s2391
          %2393 = dma.done %s2389, 2048
        $region84: #{tpu_custom_call.1} parent=79 // pred_fallthru
          _
      $region80: #{tpu_custom_call.1} parent=5 // pred_fallthru
        _
    $region6: #{tpu_custom_call.1} parent=1 // loop_footer
      %s27 = sadd.s32 1, %s23
    $region7: #{tpu_custom_call.1} parent=1 // loop_footer_branch
      %22 = sbr.rel target = $region3
    $region8: #{tpu_custom_call.1} parent=1 // loop_exit
      _
    %2394 = vsyncpa [#allocation4], 1
    %s2395 = scalar_lea.sflag [#allocation4], 1
    %2396 = vsyncpa %s2395, 1
    %2397 = vsyncpa [#allocation7], 1
    %s2398 = scalar_lea.sflag [#allocation7], 1
    %2399 = vsyncpa %s2398, 1
    %2400 = vsyncpa [#allocation5], 1
    %s2401 = scalar_lea.sflag [#allocation5], 1
    %2402 = vsyncpa %s2401, 1

</llo_original>
